<compile_context>
chip_gen: v6e
topology: v6e:2x2x1
jax: 0.10.0
libtpu: 0.0.40
codegen_flags: <defaults>
</compile_context>

<pallas_src>
import functools
import math

import jax
import jax.numpy as jnp
from jax.experimental import pallas as pl
from jax.experimental.pallas import tpu as pltpu

_GELU_C = math.sqrt(2.0 / math.pi)
_MIB = 1024 * 1024


def _ff_kernel(x_ref, w1_ref, b1_ref, w2_ref, b2_ref, g_ref, beta_ref,
               o_ref, h_ref, acc_ref):
    k = pl.program_id(1)

    @pl.when(k == 0)
    def _():
        acc_ref[...] = jnp.zeros_like(acc_ref)

    # Linear 1 slice: (tm, d_model) x (d_model, tnh) on the MXU; bf16 in, f32 acc.
    h = jnp.dot(x_ref[...].astype(jnp.bfloat16), w1_ref[...],
                preferred_element_type=jnp.float32) + b1_ref[...]

    # GELU (tanh approximation -- matches the PyTorch GELU module exactly).
    h = 0.5 * h * (1.0 + jnp.tanh(_GELU_C * (h + 0.044715 * h * h * h)))

    # Stage the intermediate in bf16 (matmul-2 consumes bf16 anyway).
    h_ref[...] = h.astype(jnp.bfloat16)

    # Linear 2 slice: (tm, tnh) x (tnh, d_model), accumulated in f32 across k.
    acc_ref[...] += jnp.dot(h_ref[...], w2_ref[...],
                            preferred_element_type=jnp.float32)

    @pl.when(k == pl.num_programs(1) - 1)
    def _():
        # Dropout is identity in eval mode. Residual + LayerNorm(eps=1e-6).
        z = x_ref[...].astype(jnp.float32) + acc_ref[...] + b2_ref[...]
        mean = jnp.mean(z, axis=-1, keepdims=True)
        ctr = z - mean
        var = jnp.mean(ctr * ctr, axis=-1, keepdims=True)
        zn = ctr * jax.lax.rsqrt(var + 1e-6)
        o_ref[...] = (zn * g_ref[...] + beta_ref[...]).astype(o_ref.dtype)


@functools.lru_cache(maxsize=1)
def _vmem_budget_bytes():
    # Generation-aware VMEM budget: physical capacity minus headroom for Mosaic
    # internal scratch (~112 MiB on v5e/v6e, ~48 MiB on v7x).
    try:
        cap = int(pltpu.get_tpu_info().vmem_capacity_bytes)
    except Exception:
        cap = 64 * _MIB  # conservative fallback: v7x per-TC VMEM
    return max(32 * _MIB, cap - 16 * _MIB)


@functools.partial(jax.jit, static_argnames=("tm", "tnh"))
def _feed_forward_padded(x, w1, b1, w2, b2, gamma, beta, *, tm, tnh):
    rows, d_model = x.shape
    d_hidden = w1.shape[1]
    assert rows % tm == 0 and d_hidden % tnh == 0
    grid = (rows // tm, d_hidden // tnh)

    in_specs = [
        pl.BlockSpec((tm, d_model), lambda i, k: (i, 0)),   # x tile (row-resident over k)
        pl.BlockSpec((d_model, tnh), lambda i, k: (0, k)),  # W1 hidden slice (bf16)
        pl.BlockSpec((1, tnh), lambda i, k: (0, k)),        # b1 hidden slice (f32)
        pl.BlockSpec((tnh, d_model), lambda i, k: (k, 0)),  # W2 hidden slice (bf16)
        pl.BlockSpec((1, d_model), lambda i, k: (0, 0)),    # b2
        pl.BlockSpec((1, d_model), lambda i, k: (0, 0)),    # gamma
        pl.BlockSpec((1, d_model), lambda i, k: (0, 0)),    # beta
    ]

    # VMEM footprint: double-buffered x/out/W1/W2 tiles + small consts + scratch.
    x_b = int(jnp.dtype(x.dtype).itemsize)
    est = (2 * tm * d_model * x_b                  # x tiles
           + 2 * tm * d_model * x_b                # out tiles
           + 2 * d_model * tnh * 2                 # W1 tiles (bf16)
           + 2 * tnh * d_model * 2                 # W2 tiles (bf16)
           + 2 * (tnh + 3 * d_model) * 4           # b1/b2/gamma/beta (f32)
           + tm * tnh * 2                          # h scratch (bf16)
           + tm * d_model * 4)                     # f32 accumulator
    vmem_limit = int(min(max(2 * est, 32 * _MIB), _vmem_budget_bytes()))

    cost = pl.CostEstimate(
        flops=2 * rows * d_model * d_hidden * 2,   # two matmuls
        transcendentals=rows * d_hidden,           # tanh in GELU
        bytes_accessed=(2 * rows * d_model * x_b   # x in + out
                        + 2 * d_model * d_hidden * 2 * 2),  # W1 + W2 (bf16)
    )

    return pl.pallas_call(
        _ff_kernel,
        out_shape=jax.ShapeDtypeStruct((rows, d_model), x.dtype),
        grid_spec=pltpu.PrefetchScalarGridSpec(
            num_scalar_prefetch=0,
            grid=grid,
            in_specs=in_specs,
            out_specs=pl.BlockSpec((tm, d_model), lambda i, k: (i, 0)),
            scratch_shapes=[
                pltpu.VMEM((tm, tnh), jnp.bfloat16),      # GELU intermediate
                pltpu.VMEM((tm, d_model), jnp.float32),   # matmul-2 accumulator
            ],
        ),
        compiler_params=pltpu.CompilerParams(
            dimension_semantics=("parallel", "arbitrary"),
            vmem_limit_bytes=vmem_limit,
        ),
        cost_estimate=cost,
    )(x, w1, b1, w2, b2, gamma, beta)


def _choose_tm(rows, requested, min_steps=4):
    # min_steps=4 keeps >=2 pipelined steps per TensorCore on v7x (2 TC/chip).
    tm = max(8, min(requested, max(rows, 8)))
    tm = max(8, (tm // 8) * 8)
    while tm >= 256 and (rows + tm - 1) // tm < min_steps:
        tm //= 2
    return tm


def _choose_tnh(d_hidden, requested):
    if d_hidden <= 128:
        return d_hidden                      # full-extent block, no lane constraint
    tnh = max(128, min(requested, d_hidden))
    return max(128, (tnh // 128) * 128)      # lane-aligned hidden tile


def feed_forward(x, w1, b1, w2, b2, gamma, beta, *, tm=512, tnh=512):
    """x: [..., d_model]; w1: [d_model, 2*d_model]; w2: [2*d_model, d_model].
    Weights may be f32 or bf16; they are cast to bf16 once here (MXU inputs).
    Output dtype follows x (pass bf16 x for a bf16 activation path)."""
    orig_shape = x.shape
    d_model = orig_shape[-1]
    x2d = x.reshape(-1, d_model)
    rows = x2d.shape[0]
    d_hidden = w1.shape[-1]

    tm = _choose_tm(rows, tm)
    tnh = _choose_tnh(d_hidden, tnh)

    # One-time dtype normalization at the pallas_call boundary.
    w1 = w1.astype(jnp.bfloat16)
    w2 = w2.astype(jnp.bfloat16)
    b1 = b1.reshape(1, d_hidden).astype(jnp.float32)
    b2 = b2.reshape(1, d_model).astype(jnp.float32)
    gamma = gamma.reshape(1, d_model).astype(jnp.float32)
    beta = beta.reshape(1, d_model).astype(jnp.float32)

    # Pad rows to a multiple of tm (zeros, sliced off afterwards).
    rows_p = ((rows + tm - 1) // tm) * tm
    xp = jnp.pad(x2d, ((0, rows_p - rows), (0, 0))) if rows_p != rows else x2d

    # Pad d_hidden to a multiple of tnh. Padded hidden units contribute exactly
    # zero: b1 pad = 0 => h_pad = GELU(0) = 0 => h_pad @ W2_pad = 0.
    dh_p = ((d_hidden + tnh - 1) // tnh) * tnh
    if dh_p != d_hidden:
        w1 = jnp.pad(w1, ((0, 0), (0, dh_p - d_hidden)))
        b1 = jnp.pad(b1, ((0, 0), (0, dh_p - d_hidden)))
        w2 = jnp.pad(w2, ((0, dh_p - d_hidden), (0, 0)))

    out = _feed_forward_padded(xp, w1, b1, w2, b2, gamma, beta, tm=tm, tnh=tnh)

    if rows_p != rows:
        out = out[:rows]
    return out.reshape(orig_shape)


if __name__ == "__main__":
    # Small, TPU-friendly shapes: d_model = 128 (lane-dense), rows = 256.
    # tnh=128 forces 2 hidden-axis steps so the accumulator path is exercised.
    batch, seq, d_model = 2, 128, 128
    d_hidden = d_model * 2

    key = jax.random.PRNGKey(0)
    kx, kw1, kb1, kw2, kb2 = jax.random.split(key, 5)

    x = jax.random.normal(kx, (batch, seq, d_model), dtype=jnp.float32)

    # PyTorch-like uniform init, stored transposed as (in, out).
    bound1 = 1.0 / math.sqrt(d_model)
    w1 = jax.random.uniform(kw1, (d_model, d_hidden), jnp.float32, -bound1, bound1)
    b1 = jax.random.uniform(kb1, (d_hidden,), jnp.float32, -bound1, bound1)
    bound2 = 1.0 / math.sqrt(d_hidden)
    w2 = jax.random.uniform(kw2, (d_hidden, d_model), jnp.float32, -bound2, bound2)
    b2 = jax.random.uniform(kb2, (d_model,), jnp.float32, -bound2, bound2)
    gamma = jnp.ones((d_model,), jnp.float32)
    beta = jnp.zeros((d_model,), jnp.float32)

    out = feed_forward(x, w1, b1, w2, b2, gamma, beta, tm=512, tnh=128)
    jax.block_until_ready(out)

    # Reference in plain JAX with the same bf16-matmul / f32-accumulate math.
    x2d = x.reshape(batch * seq, d_model)
    w1_bf = w1.astype(jnp.bfloat16)
    w2_bf = w2.astype(jnp.bfloat16)
    c = math.sqrt(2.0 / math.pi)
    h = jnp.dot(x2d.astype(jnp.bfloat16), w1_bf,
                preferred_element_type=jnp.float32) + b1[None, :]
    h = 0.5 * h * (1.0 + jnp.tanh(c * (h + 0.044715 * h ** 3)))
    y = jnp.dot(h.astype(jnp.bfloat16), w2_bf,
                preferred_element_type=jnp.float32) + b2[None, :]
    z = x2d + y
    mu = z.mean(-1, keepdims=True)
    var = ((z - mu) ** 2).mean(-1, keepdims=True)
    ref = ((z - mu) / jnp.sqrt(var + 1e-6)) * gamma[None, :] + beta[None, :]
    ref = ref.reshape(batch, seq, d_model)

    assert jnp.allclose(out, ref, atol=2e-3, rtol=2e-3), "mismatch vs reference"
    print("KERNEL_OK")
</pallas_src>

<mosaic_0001>
module attributes {stable_mosaic.version = 11 : i64} {
  func.func @_ff_kernel(%arg0: i32, %arg1: i32, %arg2: memref<128x128xf32, #tpu.memory_space<vmem>>, %arg3: memref<128x128xbf16, #tpu.memory_space<vmem>>, %arg4: memref<1x128xf32, #tpu.memory_space<vmem>>, %arg5: memref<128x128xbf16, #tpu.memory_space<vmem>>, %arg6: memref<1x128xf32, #tpu.memory_space<vmem>>, %arg7: memref<1x128xf32, #tpu.memory_space<vmem>>, %arg8: memref<1x128xf32, #tpu.memory_space<vmem>>, %arg9: memref<128x128xf32, #tpu.memory_space<vmem>>, %arg10: memref<128x128xbf16, #tpu.memory_space<vmem>>, %arg11: memref<128x128xf32, #tpu.memory_space<vmem>>) attributes {dimension_semantics = [#tpu.dimension_semantics<parallel>, #tpu.dimension_semantics<arbitrary>], iteration_bounds = array<i64: 2, 2>, scalar_prefetch = 0 : i64, scratch_operands = 2 : i64, tpu.core_type = #tpu.core_type<tc>, window_params = [{transform_indices = @transform_0, window_bounds = array<i64: 128, 128>}, {transform_indices = @transform_1, window_bounds = array<i64: 128, 128>}, {transform_indices = @transform_2, window_bounds = array<i64: 1, 128>}, {transform_indices = @transform_3, window_bounds = array<i64: 128, 128>}, {pipeline_mode = #tpu.pipeline_mode<synchronous>, transform_indices = @transform_4, window_bounds = array<i64: 1, 128>}, {pipeline_mode = #tpu.pipeline_mode<synchronous>, transform_indices = @transform_5, window_bounds = array<i64: 1, 128>}, {pipeline_mode = #tpu.pipeline_mode<synchronous>, transform_indices = @transform_6, window_bounds = array<i64: 1, 128>}, {transform_indices = @transform_7, window_bounds = array<i64: 128, 128>}]} {
    %c0_i32 = arith.constant 0 : i32
    %0 = arith.cmpi eq, %arg1, %c0_i32 : i32
    %1 = arith.extui %0 : i1 to i32
    %c0_i32_0 = arith.constant 0 : i32
    %2 = arith.cmpi ne, %1, %c0_i32_0 : i32
    scf.if %2 {
      %cst_22 = arith.constant 0.000000e+00 : f32
      %34 = vector.broadcast %cst_22 : f32 to vector<128x128xf32>
      %c0_23 = arith.constant 0 : index
      %c0_24 = arith.constant 0 : index
      %35 = vector.load %arg11[%c0_23, %c0_24] : memref<128x128xf32, #tpu.memory_space<vmem>>, vector<128x128xf32>
      tpu.vector_store %arg11[%c0_23, %c0_24], %34 {strides = array<i32>} : memref<128x128xf32, #tpu.memory_space<vmem>>, vector<128x128xf32>,
    } else {
    }
    %c0 = arith.constant 0 : index
    %c0_1 = arith.constant 0 : index
    %3 = vector.load %arg2[%c0, %c0_1] : memref<128x128xf32, #tpu.memory_space<vmem>>, vector<128x128xf32>
    %4 = arith.truncf %3 : vector<128x128xf32> to vector<128x128xbf16>
    %c0_2 = arith.constant 0 : index
    %c0_3 = arith.constant 0 : index
    %5 = vector.load %arg3[%c0_2, %c0_3] : memref<128x128xbf16, #tpu.memory_space<vmem>>, vector<128x128xbf16>
    %cst = arith.constant dense<0.000000e+00> : vector<128x128xf32>
    %6 = tpu.matmul %4, %5, %cst {dimension_numbers = #tpu.dot_dimension_numbers<[1], [0], [0], [1], [0, 0, 1, 1], [], []>} : vector<128x128xbf16>, vector<128x128xbf16>, vector<128x128xf32> -> vector<128x128xf32>
    %c0_4 = arith.constant 0 : index
    %c0_5 = arith.constant 0 : index
    %7 = vector.load %arg4[%c0_4, %c0_5] : memref<1x128xf32, #tpu.memory_space<vmem>>, vector<1x128xf32>
    %8 = vector.broadcast %7 : vector<1x128xf32> to vector<128x128xf32>
    %9 = arith.addf %6, %8 : vector<128x128xf32>
    %cst_6 = arith.constant 5.000000e-01 : f32
    %10 = vector.broadcast %cst_6 : f32 to vector<128x128xf32>
    %11 = arith.mulf %10, %9 : vector<128x128xf32>
    %cst_7 = arith.constant 4.471500e-02 : f32
    %12 = vector.broadcast %cst_7 : f32 to vector<128x128xf32>
    %13 = arith.mulf %12, %9 : vector<128x128xf32>
    %14 = arith.mulf %13, %9 : vector<128x128xf32>
    %15 = arith.mulf %14, %9 : vector<128x128xf32>
    %16 = arith.addf %9, %15 : vector<128x128xf32>
    %cst_8 = arith.constant 0.797884583 : f32
    %17 = vector.broadcast %cst_8 : f32 to vector<128x128xf32>
    %18 = arith.mulf %17, %16 : vector<128x128xf32>
    %19 = math.tanh %18 : vector<128x128xf32>
    %cst_9 = arith.constant 1.000000e+00 : f32
    %20 = vector.broadcast %cst_9 : f32 to vector<128x128xf32>
    %21 = arith.addf %20, %19 : vector<128x128xf32>
    %22 = arith.mulf %11, %21 : vector<128x128xf32>
    %23 = arith.truncf %22 : vector<128x128xf32> to vector<128x128xbf16>
    %c0_10 = arith.constant 0 : index
    %c0_11 = arith.constant 0 : index
    %24 = vector.load %arg10[%c0_10, %c0_11] : memref<128x128xbf16, #tpu.memory_space<vmem>>, vector<128x128xbf16>
    tpu.vector_store %arg10[%c0_10, %c0_11], %23 {strides = array<i32>} : memref<128x128xbf16, #tpu.memory_space<vmem>>, vector<128x128xbf16>,
    %c0_12 = arith.constant 0 : index
    %c0_13 = arith.constant 0 : index
    %25 = vector.load %arg11[%c0_12, %c0_13] : memref<128x128xf32, #tpu.memory_space<vmem>>, vector<128x128xf32>
    %c0_14 = arith.constant 0 : index
    %c0_15 = arith.constant 0 : index
    %26 = vector.load %arg10[%c0_14, %c0_15] : memref<128x128xbf16, #tpu.memory_space<vmem>>, vector<128x128xbf16>
    %c0_16 = arith.constant 0 : index
    %c0_17 = arith.constant 0 : index
    %27 = vector.load %arg5[%c0_16, %c0_17] : memref<128x128xbf16, #tpu.memory_space<vmem>>, vector<128x128xbf16>
    %cst_18 = arith.constant dense<0.000000e+00> : vector<128x128xf32>
    %28 = tpu.matmul %26, %27, %cst_18 {dimension_numbers = #tpu.dot_dimension_numbers<[1], [0], [0], [1], [0, 0, 1, 1], [], []>} : vector<128x128xbf16>, vector<128x128xbf16>, vector<128x128xf32> -> vector<128x128xf32>
    %29 = arith.addf %25, %28 : vector<128x128xf32>
    %c0_19 = arith.constant 0 : index
    %c0_20 = arith.constant 0 : index
    %30 = vector.load %arg11[%c0_19, %c0_20] : memref<128x128xf32, #tpu.memory_space<vmem>>, vector<128x128xf32>
    tpu.vector_store %arg11[%c0_19, %c0_20], %29 {strides = array<i32>} : memref<128x128xf32, #tpu.memory_space<vmem>>, vector<128x128xf32>,
    %c1_i32 = arith.constant 1 : i32
    %31 = arith.cmpi eq, %arg1, %c1_i32 : i32
    %32 = arith.extui %31 : i1 to i32
    %c0_i32_21 = arith.constant 0 : i32
    %33 = arith.cmpi ne, %32, %c0_i32_21 : i32
    scf.if %33 {
      %c0_22 = arith.constant 0 : index
      %c0_23 = arith.constant 0 : index
      %34 = vector.load %arg2[%c0_22, %c0_23] : memref<128x128xf32, #tpu.memory_space<vmem>>, vector<128x128xf32>
      %c0_24 = arith.constant 0 : index
      %c0_25 = arith.constant 0 : index
      %35 = vector.load %arg11[%c0_24, %c0_25] : memref<128x128xf32, #tpu.memory_space<vmem>>, vector<128x128xf32>
      %36 = arith.addf %34, %35 : vector<128x128xf32>
      %c0_26 = arith.constant 0 : index
      %c0_27 = arith.constant 0 : index
      %37 = vector.load %arg6[%c0_26, %c0_27] : memref<1x128xf32, #tpu.memory_space<vmem>>, vector<1x128xf32>
      %38 = vector.broadcast %37 : vector<1x128xf32> to vector<128x128xf32>
      %39 = arith.addf %36, %38 : vector<128x128xf32>
      %cst_28 = arith.constant dense<0.000000e+00> : vector<128xf32>
      %40 = vector.multi_reduction <add>, %39, %cst_28 [1] : vector<128x128xf32> to vector<128xf32>
      %41 = vector.shape_cast %40 : vector<128xf32> to vector<128x1xf32>
      %cst_29 = arith.constant 1.280000e+02 : f32
      %42 = vector.broadcast %cst_29 : f32 to vector<128x1xf32>
      %43 = arith.divf %41, %42 : vector<128x1xf32>
      %44 = vector.broadcast %43 : vector<128x1xf32> to vector<128x128xf32>
      %45 = arith.subf %39, %44 : vector<128x128xf32>
      %46 = arith.mulf %45, %45 : vector<128x128xf32>
      %cst_30 = arith.constant dense<0.000000e+00> : vector<128xf32>
      %47 = vector.multi_reduction <add>, %46, %cst_30 [1] : vector<128x128xf32> to vector<128xf32>
      %48 = vector.shape_cast %47 : vector<128xf32> to vector<128x1xf32>
      %cst_31 = arith.constant 1.280000e+02 : f32
      %49 = vector.broadcast %cst_31 : f32 to vector<128x1xf32>
      %50 = arith.divf %48, %49 : vector<128x1xf32>
      %cst_32 = arith.constant 9.99999997E-7 : f32
      %51 = vector.broadcast %cst_32 : f32 to vector<128x1xf32>
      %52 = arith.addf %50, %51 : vector<128x1xf32>
      %53 = math.rsqrt %52 : vector<128x1xf32>
      %54 = vector.broadcast %53 : vector<128x1xf32> to vector<128x128xf32>
      %55 = arith.mulf %45, %54 : vector<128x128xf32>
      %c0_33 = arith.constant 0 : index
      %c0_34 = arith.constant 0 : index
      %56 = vector.load %arg7[%c0_33, %c0_34] : memref<1x128xf32, #tpu.memory_space<vmem>>, vector<1x128xf32>
      %57 = vector.broadcast %56 : vector<1x128xf32> to vector<128x128xf32>
      %58 = arith.mulf %55, %57 : vector<128x128xf32>
      %c0_35 = arith.constant 0 : index
      %c0_36 = arith.constant 0 : index
      %59 = vector.load %arg8[%c0_35, %c0_36] : memref<1x128xf32, #tpu.memory_space<vmem>>, vector<1x128xf32>
      %60 = vector.broadcast %59 : vector<1x128xf32> to vector<128x128xf32>
      %61 = arith.addf %58, %60 : vector<128x128xf32>
      %c0_37 = arith.constant 0 : index
      %c0_38 = arith.constant 0 : index
      %62 = vector.load %arg9[%c0_37, %c0_38] : memref<128x128xf32, #tpu.memory_space<vmem>>, vector<128x128xf32>
      tpu.vector_store %arg9[%c0_37, %c0_38], %61 {strides = array<i32>} : memref<128x128xf32, #tpu.memory_space<vmem>>, vector<128x128xf32>,
    } else {
    }
    return
  }
  func.func @transform_0(%arg0: i32, %arg1: i32) -> (i32, i32) {
    %c0_i32 = arith.constant 0 : i32
    %c0_i32_0 = arith.constant 0 : i32
    return %arg0, %c0_i32 : i32, i32
  }
  func.func @transform_1(%arg0: i32, %arg1: i32) -> (i32, i32) {
    %c0_i32 = arith.constant 0 : i32
    %c0_i32_0 = arith.constant 0 : i32
    return %c0_i32, %arg1 : i32, i32
  }
  func.func @transform_2(%arg0: i32, %arg1: i32) -> (i32, i32) {
    %c0_i32 = arith.constant 0 : i32
    %c0_i32_0 = arith.constant 0 : i32
    return %c0_i32, %arg1 : i32, i32
  }
  func.func @transform_3(%arg0: i32, %arg1: i32) -> (i32, i32) {
    %c0_i32 = arith.constant 0 : i32
    %c0_i32_0 = arith.constant 0 : i32
    return %arg1, %c0_i32 : i32, i32
  }
  func.func @transform_4(%arg0: i32, %arg1: i32) -> (i32, i32) {
    %c0_i32 = arith.constant 0 : i32
    %c0_i32_0 = arith.constant 0 : i32
    %c0_i32_1 = arith.constant 0 : i32
    return %c0_i32, %c0_i32_0 : i32, i32
  }
  func.func @transform_5(%arg0: i32, %arg1: i32) -> (i32, i32) {
    %c0_i32 = arith.constant 0 : i32
    %c0_i32_0 = arith.constant 0 : i32
    %c0_i32_1 = arith.constant 0 : i32
    return %c0_i32, %c0_i32_0 : i32, i32
  }
  func.func @transform_6(%arg0: i32, %arg1: i32) -> (i32, i32) {
    %c0_i32 = arith.constant 0 : i32
    %c0_i32_0 = arith.constant 0 : i32
    %c0_i32_1 = arith.constant 0 : i32
    return %c0_i32, %c0_i32_0 : i32, i32
  }
  func.func @transform_7(%arg0: i32, %arg1: i32) -> (i32, i32) {
    %c0_i32 = arith.constant 0 : i32
    %c0_i32_0 = arith.constant 0 : i32
    return %arg0, %c0_i32 : i32, i32
  }
}

</mosaic_0001>

<llo_original>
// kernel: _feed_forward_padded.1
$region0: #{_feed_forward_padded.1}
  #allocation0 [shape = 'u32[]', space=smem, size = 0x4, offset = 0x4, fixed_abs, tag = 'smem constant byte address 0x4 - core index']
  #allocation1 [shape = 'u32[144,128]{1,0:T(1,128)}', space=vmem, size = 0x12000, scoped, tag = 'internal scratch']
  #allocation2 [shape = 'bf16[128,128]{1,0:T(8,128)(2,1)}', space=vmem, size = 0x8000, scoped, tag = 'scratch operand']
  #allocation3 [shape = 'f32[128,128]{1,0:T(8,128)}', space=vmem, size = 0x10000, scoped, tag = 'scratch operand']
  %s0 = inlined_call_operand.hbm [shape: f32[256,128], index: 0, kind: input, shape index: {}]
  %s1 = inlined_call_operand.hbm [shape: bf16[128,256], index: 1, kind: input, shape index: {}]
  %s2 = inlined_call_operand.vmem [shape: f32[1,256], index: 2, kind: input, shape index: {}]
  %s3 = inlined_call_operand.hbm [shape: bf16[256,128], index: 3, kind: input, shape index: {}]
  %s4 = inlined_call_operand.vmem [shape: f32[1,128], index: 4, kind: input, shape index: {}]
  %s5 = inlined_call_operand.vmem [shape: f32[1,128], index: 5, kind: input, shape index: {}]
  %s6 = inlined_call_operand.vmem [shape: f32[1,128], index: 6, kind: input, shape index: {}]
  %s7 = inlined_call_operand.hbm [shape: f32[256,128], index: 7, kind: output, shape index: {}]
  %s8 = sld [smem:[#allocation0]]
  $region81: #{_feed_forward_padded.1} parent=0
    _
  %s10 = ssub.s32 1, %s8
  %s11 = scalar_select 0, %s10, %s8
  $region1: #{_feed_forward_padded.1} parent=0
    #allocation4 [shape = 'u8[131072]{0}', space=vmem, size = 0x20000, scoped, tag = 'input window, operand 0']
    #allocation5 [shape = 's32[2]{0}', space=sflag, size = 0x8, scoped, tag = 'scoped memory for _feed_forward_padded.1']
    #allocation6 [shape = 's32[2]{0}', space=sflag, size = 0x8, scoped, tag = 'scoped memory for _feed_forward_padded.1']
    #allocation7 [shape = 'u8[65536]{0}', space=vmem, size = 0x10000, scoped, tag = 'input window, operand 1']
    #allocation8 [shape = 's32[2]{0}', space=sflag, size = 0x8, scoped, tag = 'scoped memory for _feed_forward_padded.1']
    #allocation9 [shape = 'u8[65536]{0}', space=vmem, size = 0x10000, scoped, tag = 'input window, operand 3']
    #allocation10 [shape = 'u8[131072]{0}', space=vmem, size = 0x20000, scoped, tag = 'output window, operand 0']
    %12 = vsyncpa [#allocation5], 0
    %s13 = scalar_lea.sflag [#allocation5], 1
    %14 = vsyncpa %s13, 0
    %15 = vsyncpa [#allocation8], 0
    %s16 = scalar_lea.sflag [#allocation8], 1
    %17 = vsyncpa %s16, 0
    %18 = vsyncpa [#allocation6], 0
    %s19 = scalar_lea.sflag [#allocation6], 1
    %20 = vsyncpa %s19, 0
    loop: start=0, step=1, limit=6
    $region2: #{_feed_forward_padded.1} parent=1 // loop_pre_header
      _
    $region3: #{_feed_forward_padded.1} parent=1 // loop_header
      %s22 = sphi 0, %s26
      %p23 = scmp.ge.s32.totalorder %s22, 6
      %s29 = sphi 0, %s41
      %s30 = sphi 0, %s37
      %s31 = sphi 0, %s29
      %s32 = sphi 0, %s30
      %s33 = sphi 0, %s31
      %s34 = sphi 0, %s32
      %s44 = sphi 0, %s46
      %s47 = sphi 0, %s44
      %s48 = sphi 0, %s47
      %s64 = sphi 0, %s48
      %s70 = sphi 0, %s72
      %s73 = sphi 0, %s70
      %s74 = sphi 0, %s73
      %s90 = sphi 0, %s74
      %s96 = sphi 0, %s98
      %s99 = sphi 0, %s96
      %s100 = sphi 0, %s99
      %s116 = sphi 0, %s100
      %s122 = sphi 0, %s124
      %s125 = sphi 0, %s122
      %s126 = sphi 0, %s125
      %s142 = sphi 0, %s126
      %s146 = sphi 0, %s146
      %s148 = sphi 0, %s146
      %s149 = sphi 0, %s148
      %s163 = sphi 0, %s149
      %s167 = sphi 0, %s167
      %s169 = sphi 0, %s167
      %s170 = sphi 0, %s169
      %s184 = sphi 0, %s170
      %s188 = sphi 0, %s188
      %s190 = sphi 0, %s188
      %s191 = sphi 0, %s190
      %s205 = sphi 0, %s191
      %s211 = sphi 0, %s213
      %s214 = sphi 0, %s211
      %s215 = sphi 0, %s214
      %s231 = sphi 0, %s215
    $region4: #{_feed_forward_padded.1} parent=1 // loop_header_branch
      %25 = sbr.rel (%p23) target = $region8
    $region5: #{_feed_forward_padded.1} parent=1 // loop_body
      %s27 = ssub.s32 %s22, 1
      %s28 = ssub.s32 %s22, 2
      %s35 = sadd.s32 1, %s30
      %p36 = scmp.ge.s32.totalorder %s35, 2
      %s37 = scalar_select %p36, 0, %s35
      %s38 = sadd.s32 1, %s29
      %s39 = scalar_select %p36, %s38, %s29
      %p40 = scmp.ge.s32.totalorder %s39, 2
      %s41 = scalar_select %p40, 0, %s39
      %s42 = ssub.s32 %s29, %s41
      %p43 = scmp.eq.s32.totalorder %s42, 0
      %s45 = sadd.s32 %s44, 1
      %s46 = scalar_select %p43, %s44, %s45
      %p49 = pneg %p43
      %p50 = scmp.eq.s32.totalorder %s22, 3
      %p51 = por %p49, %p50
      %p52 = scmp.ne.s32.totalorder %s44, %s47
      %p53 = scmp.eq.s32.totalorder %s22, 0
      %p54 = por %p52, %p53
      %p55 = scmp.ne.s32.totalorder %s44, %s47
      %p56 = scmp.eq.s32.totalorder %s27, 3
      %p57 = por %p55, %p56
      %p58 = scmp.ne.s32.totalorder %s47, %s48
      %p59 = scmp.eq.s32.totalorder %s27, 0
      %p60 = por %p58, %p59
      %p61 = scmp.ne.s32.totalorder %s47, %s48
      %p62 = scmp.eq.s32.totalorder %s28, 3
      %p63 = por %p61, %p62
      %p65 = scmp.ne.s32.totalorder %s48, %s64
      %p66 = scmp.eq.s32.totalorder %s28, 0
      %p67 = por %p65, %p66
      %s68 = ssub.s32 %s30, %s37
      %p69 = scmp.eq.s32.totalorder %s68, 0
      %s71 = sadd.s32 %s70, 1
      %s72 = scalar_select %p69, %s70, %s71
      %p75 = pneg %p69
      %p76 = scmp.eq.s32.totalorder %s22, 3
      %p77 = por %p75, %p76
      %p78 = scmp.ne.s32.totalorder %s70, %s73
      %p79 = scmp.eq.s32.totalorder %s22, 0
      %p80 = por %p78, %p79
      %p81 = scmp.ne.s32.totalorder %s70, %s73
      %p82 = scmp.eq.s32.totalorder %s27, 3
      %p83 = por %p81, %p82
      %p84 = scmp.ne.s32.totalorder %s73, %s74
      %p85 = scmp.eq.s32.totalorder %s27, 0
      %p86 = por %p84, %p85
      %p87 = scmp.ne.s32.totalorder %s73, %s74
      %p88 = scmp.eq.s32.totalorder %s28, 3
      %p89 = por %p87, %p88
      %p91 = scmp.ne.s32.totalorder %s74, %s90
      %p92 = scmp.eq.s32.totalorder %s28, 0
      %p93 = por %p91, %p92
      %s94 = ssub.s32 %s30, %s37
      %p95 = scmp.eq.s32.totalorder %s94, 0
      %s97 = sadd.s32 %s96, 1
      %s98 = scalar_select %p95, %s96, %s97
      %p101 = pneg %p95
      %p102 = scmp.eq.s32.totalorder %s22, 3
      %p103 = por %p101, %p102
      %p104 = scmp.ne.s32.totalorder %s96, %s99
      %p105 = scmp.eq.s32.totalorder %s22, 0
      %p106 = por %p104, %p105
      %p107 = scmp.ne.s32.totalorder %s96, %s99
      %p108 = scmp.eq.s32.totalorder %s27, 3
      %p109 = por %p107, %p108
      %p110 = scmp.ne.s32.totalorder %s99, %s100
      %p111 = scmp.eq.s32.totalorder %s27, 0
      %p112 = por %p110, %p111
      %p113 = scmp.ne.s32.totalorder %s99, %s100
      %p114 = scmp.eq.s32.totalorder %s28, 3
      %p115 = por %p113, %p114
      %p117 = scmp.ne.s32.totalorder %s100, %s116
      %p118 = scmp.eq.s32.totalorder %s28, 0
      %p119 = por %p117, %p118
      %s120 = ssub.s32 %s30, %s37
      %p121 = scmp.eq.s32.totalorder %s120, 0
      %s123 = sadd.s32 %s122, 1
      %s124 = scalar_select %p121, %s122, %s123
      %p127 = pneg %p121
      %p128 = scmp.eq.s32.totalorder %s22, 3
      %p129 = por %p127, %p128
      %p130 = scmp.ne.s32.totalorder %s122, %s125
      %p131 = scmp.eq.s32.totalorder %s22, 0
      %p132 = por %p130, %p131
      %p133 = scmp.ne.s32.totalorder %s122, %s125
      %p134 = scmp.eq.s32.totalorder %s27, 3
      %p135 = por %p133, %p134
      %p136 = scmp.ne.s32.totalorder %s125, %s126
      %p137 = scmp.eq.s32.totalorder %s27, 0
      %p138 = por %p136, %p137
      %p139 = scmp.ne.s32.totalorder %s125, %s126
      %p140 = scmp.eq.s32.totalorder %s28, 3
      %p141 = por %p139, %p140
      %p143 = scmp.ne.s32.totalorder %s126, %s142
      %p144 = scmp.eq.s32.totalorder %s28, 0
      %p145 = por %p143, %p144
      %s147 = sadd.s32 %s146, 1
      %p150 = scmp.eq.s32.totalorder %s22, 3
      %p151 = scmp.ne.s32.totalorder %s146, %s148
      %p152 = scmp.eq.s32.totalorder %s22, 0
      %p153 = por %p151, %p152
      %p154 = scmp.ne.s32.totalorder %s146, %s148
      %p155 = scmp.eq.s32.totalorder %s27, 3
      %p156 = por %p154, %p155
      %p157 = scmp.ne.s32.totalorder %s148, %s149
      %p158 = scmp.eq.s32.totalorder %s27, 0
      %p159 = por %p157, %p158
      %p160 = scmp.ne.s32.totalorder %s148, %s149
      %p161 = scmp.eq.s32.totalorder %s28, 3
      %p162 = por %p160, %p161
      %p164 = scmp.ne.s32.totalorder %s149, %s163
      %p165 = scmp.eq.s32.totalorder %s28, 0
      %p166 = por %p164, %p165
      %s168 = sadd.s32 %s167, 1
      %p171 = scmp.eq.s32.totalorder %s22, 3
      %p172 = scmp.ne.s32.totalorder %s167, %s169
      %p173 = scmp.eq.s32.totalorder %s22, 0
      %p174 = por %p172, %p173
      %p175 = scmp.ne.s32.totalorder %s167, %s169
      %p176 = scmp.eq.s32.totalorder %s27, 3
      %p177 = por %p175, %p176
      %p178 = scmp.ne.s32.totalorder %s169, %s170
      %p179 = scmp.eq.s32.totalorder %s27, 0
      %p180 = por %p178, %p179
      %p181 = scmp.ne.s32.totalorder %s169, %s170
      %p182 = scmp.eq.s32.totalorder %s28, 3
      %p183 = por %p181, %p182
      %p185 = scmp.ne.s32.totalorder %s170, %s184
      %p186 = scmp.eq.s32.totalorder %s28, 0
      %p187 = por %p185, %p186
      %s189 = sadd.s32 %s188, 1
      %p192 = scmp.eq.s32.totalorder %s22, 3
      %p193 = scmp.ne.s32.totalorder %s188, %s190
      %p194 = scmp.eq.s32.totalorder %s22, 0
      %p195 = por %p193, %p194
      %p196 = scmp.ne.s32.totalorder %s188, %s190
      %p197 = scmp.eq.s32.totalorder %s27, 3
      %p198 = por %p196, %p197
      %p199 = scmp.ne.s32.totalorder %s190, %s191
      %p200 = scmp.eq.s32.totalorder %s27, 0
      %p201 = por %p199, %p200
      %p202 = scmp.ne.s32.totalorder %s190, %s191
      %p203 = scmp.eq.s32.totalorder %s28, 3
      %p204 = por %p202, %p203
      %p206 = scmp.ne.s32.totalorder %s191, %s205
      %p207 = scmp.eq.s32.totalorder %s28, 0
      %p208 = por %p206, %p207
      %s209 = ssub.s32 %s29, %s41
      %p210 = scmp.eq.s32.totalorder %s209, 0
      %s212 = sadd.s32 %s211, 1
      %s213 = scalar_select %p210, %s211, %s212
      %p216 = pneg %p210
      %p217 = scmp.eq.s32.totalorder %s22, 3
      %p218 = por %p216, %p217
      %p219 = scmp.ne.s32.totalorder %s211, %s214
      %p220 = scmp.eq.s32.totalorder %s22, 0
      %p221 = por %p219, %p220
      %p222 = scmp.ne.s32.totalorder %s211, %s214
      %p223 = scmp.eq.s32.totalorder %s27, 3
      %p224 = por %p222, %p223
      %p225 = scmp.ne.s32.totalorder %s214, %s215
      %p226 = scmp.eq.s32.totalorder %s27, 0
      %p227 = por %p225, %p226
      %p228 = scmp.ne.s32.totalorder %s214, %s215
      %p229 = scmp.eq.s32.totalorder %s28, 3
      %p230 = por %p228, %p229
      %p232 = scmp.ne.s32.totalorder %s215, %s231
      %p233 = scmp.eq.s32.totalorder %s28, 0
      %p234 = por %p232, %p233
      %p235 = scmp.le.s32.totalorder 1, %s22
      %p236 = scmp.lt.s32.totalorder %s22, 5
      %p237 = pnand %p235, %p236
      %p238 = pneg %p237
      // Predicated region
      $region9: #{_feed_forward_padded.1} parent=5 // pred_check
        _
      $region10: #{_feed_forward_padded.1} parent=5 // pred_check_branch
        %240 = sbr.rel (%p237) target = $region12
      $region11: #{_feed_forward_padded.1} parent=5 // pred_region
        %s241 = ssub.s32 %s22, 1
        // Predicated region
        $region13: #{_feed_forward_padded.1} parent=11 // pred_check
          %p242 = pneg %p159
        $region14: #{_feed_forward_padded.1} parent=11 // pred_check_branch
          %244 = sbr.rel (%p242) target = $region16
        $region15: #{_feed_forward_padded.1} parent=11 // pred_region
          _
        $region16: #{_feed_forward_padded.1} parent=11 // pred_fallthru
          _
        // Predicated region
        $region17: #{_feed_forward_padded.1} parent=11 // pred_check
          %p245 = pneg %p180
        $region18: #{_feed_forward_padded.1} parent=11 // pred_check_branch
          %247 = sbr.rel (%p245) target = $region20
        $region19: #{_feed_forward_padded.1} parent=11 // pred_region
          _
        $region20: #{_feed_forward_padded.1} parent=11 // pred_fallthru
          _
        // Predicated region
        $region21: #{_feed_forward_padded.1} parent=11 // pred_check
          %p248 = pneg %p201
        $region22: #{_feed_forward_padded.1} parent=11 // pred_check_branch
          %250 = sbr.rel (%p248) target = $region24
        $region23: #{_feed_forward_padded.1} parent=11 // pred_region
          _
        $region24: #{_feed_forward_padded.1} parent=11 // pred_fallthru
          _
      $region12: #{_feed_forward_padded.1} parent=5 // pred_fallthru
        _
      %p251 = scmp.lt.s32.totalorder %s22, 4
      // Predicated region
      $region25: #{_feed_forward_padded.1} parent=5 // pred_check
        %p252 = pneg %p251
      $region26: #{_feed_forward_padded.1} parent=5 // pred_check_branch
        %254 = sbr.rel (%p252) target = $region28
      $region27: #{_feed_forward_padded.1} parent=5 // pred_region
        // Predicated region
        $region29: #{_feed_forward_padded.1} parent=27 // pred_check
          %p255 = pneg %p54
        $region30: #{_feed_forward_padded.1} parent=27 // pred_check_branch
          %257 = sbr.rel (%p255) target = $region32
        $region31: #{_feed_forward_padded.1} parent=27 // pred_region
          %s258 = sand.u32 %s44, 1
          %s259 = scalar_lea.sflag [#allocation5], %s258
          %s260 = sand.u32 %s44, 1
          %s261 = smul.addr %s260, 128
          %s262 = scalar_lea.vmem [#allocation4], %s261
          %s263 = smul.u32 16, %s29
          %s265 = ssub.s32 2048, 2048
          %266 = vsyncadd %s259, %s265
          %s267 = smul.addr %s263, 128
          %s268 = scalar_lea.hbm %s0, %s267
          %s269 = sshll.u32 %s262, 4
          %s270 = int_to_ptr.vmem [resolvable:$true] %s269
          %275 = dma.hbm_to_vmem [thread:$0]  %s268, 2048, %s270, %s259, 128, 128, 8
        $region32: #{_feed_forward_padded.1} parent=27 // pred_fallthru
          _
        // Predicated region
        $region33: #{_feed_forward_padded.1} parent=27 // pred_check
          %p276 = pneg %p80
        $region34: #{_feed_forward_padded.1} parent=27 // pred_check_branch
          %278 = sbr.rel (%p276) target = $region36
        $region35: #{_feed_forward_padded.1} parent=27 // pred_region
          %s279 = sand.u32 %s22, 1
          %s280 = scalar_lea.sflag [#allocation8], %s279
          %s281 = sand.u32 %s70, 1
          %s282 = smul.addr %s281, 64
          %s283 = scalar_lea.vmem [#allocation7], %s282
          %s285 = ssub.s32 1024, 1024
          %286 = vsyncadd %s280, %s285
          %s287 = smul.addr %s30, 64
          %s288 = scalar_lea.hbm %s1, %s287
          %s289 = sshll.u32 %s283, 4
          %s290 = int_to_ptr.vmem [resolvable:$true] %s289
          %295 = dma.hbm_to_vmem [thread:$0]  %s288, 1024, %s290, %s280, 128, 64, 4
        $region36: #{_feed_forward_padded.1} parent=27 // pred_fallthru
          _
        // Predicated region
        $region37: #{_feed_forward_padded.1} parent=27 // pred_check
          %p296 = pneg %p106
        $region38: #{_feed_forward_padded.1} parent=27 // pred_check_branch
          %298 = sbr.rel (%p296) target = $region40
        $region39: #{_feed_forward_padded.1} parent=27 // pred_region
          %p299 = scmp.lt.s32.totalorder %s30, 1
          %s300 = scalar_select %p299, %s30, 1
          %s301 = scalar_lea.vmem %s2, %s300
        $region40: #{_feed_forward_padded.1} parent=27 // pred_fallthru
          _
        // Predicated region
        $region41: #{_feed_forward_padded.1} parent=27 // pred_check
          %p302 = pneg %p132
        $region42: #{_feed_forward_padded.1} parent=27 // pred_check_branch
          %304 = sbr.rel (%p302) target = $region44
        $region43: #{_feed_forward_padded.1} parent=27 // pred_region
          %s305 = sand.u32 %s22, 1
          %s306 = scalar_lea.sflag [#allocation8], %s305
          %s307 = sand.u32 %s122, 1
          %s308 = smul.addr %s307, 64
          %s309 = scalar_lea.vmem [#allocation9], %s308
          %s310 = smul.u32 16, %s30
          %s312 = ssub.s32 1024, 1024
          %313 = vsyncadd %s306, %s312
          %s314 = smul.addr %s310, 64
          %s315 = scalar_lea.hbm %s3, %s314
          %s316 = sshll.u32 %s309, 4
          %s317 = int_to_ptr.vmem [resolvable:$true] %s316
          %322 = dma.hbm_to_vmem [thread:$0]  %s315, 1024, %s317, %s306, 64, 64, 4
        $region44: #{_feed_forward_padded.1} parent=27 // pred_fallthru
          _
      $region28: #{_feed_forward_padded.1} parent=5 // pred_fallthru
        _
      %p323 = scmp.le.s32.totalorder 1, %s22
      %p324 = scmp.lt.s32.totalorder %s22, 5
      %p325 = pnand %p323, %p324
      %p326 = pneg %p325
      // Predicated region
      $region45: #{_feed_forward_padded.1} parent=5 // pred_check
        _
      $region46: #{_feed_forward_padded.1} parent=5 // pred_check_branch
        %328 = sbr.rel (%p325) target = $region48
      $region47: #{_feed_forward_padded.1} parent=5 // pred_region
        %s329 = ssub.s32 %s22, 1
        %s330 = sand.u32 %s47, 1
        %s331 = scalar_lea.sflag [#allocation5], %s330
        %s332 = sand.u32 %s47, 1
        %s333 = smul.addr %s332, 128
        %s334 = scalar_lea.vmem [#allocation4], %s333
        // Predicated region
        $region49: #{_feed_forward_padded.1} parent=47 // pred_check
          %p335 = pneg %p60
        $region50: #{_feed_forward_padded.1} parent=47 // pred_check_branch
          %337 = sbr.rel (%p335) target = $region52
        $region51: #{_feed_forward_padded.1} parent=47 // pred_region
          %338 = dma.done %s331, 2048
        $region52: #{_feed_forward_padded.1} parent=47 // pred_fallthru
          _
        %s339 = sand.u32 %s27, 1
        %s340 = scalar_lea.sflag [#allocation8], %s339
        %s341 = sand.u32 %s73, 1
        %s342 = smul.addr %s341, 64
        %s343 = scalar_lea.vmem [#allocation7], %s342
        // Predicated region
        $region53: #{_feed_forward_padded.1} parent=47 // pred_check
          %p344 = pneg %p86
        $region54: #{_feed_forward_padded.1} parent=47 // pred_check_branch
          %346 = sbr.rel (%p344) target = $region56
        $region55: #{_feed_forward_padded.1} parent=47 // pred_region
          %347 = dma.done %s340, 1024
        $region56: #{_feed_forward_padded.1} parent=47 // pred_fallthru
          _
        %s348 = sand.u32 %s27, 1
        %s349 = scalar_lea.sflag [#allocation8], %s348
        %s350 = sand.u32 %s125, 1
        %s351 = smul.addr %s350, 64
        %s352 = scalar_lea.vmem [#allocation9], %s351
        // Predicated region
        $region57: #{_feed_forward_padded.1} parent=47 // pred_check
          %p353 = pneg %p138
        $region58: #{_feed_forward_padded.1} parent=47 // pred_check_branch
          %355 = sbr.rel (%p353) target = $region60
        $region59: #{_feed_forward_padded.1} parent=47 // pred_region
          %356 = dma.done %s349, 1024
        $region60: #{_feed_forward_padded.1} parent=47 // pred_fallthru
          _
        %s357 = sand.u32 %s47, 1
        %s358 = scalar_lea.sflag [#allocation5], %s357
        %s359 = sand.u32 %s47, 1
        %s360 = smul.addr %s359, 128
        %s361 = scalar_lea.vmem [#allocation4], %s360
        %p362 = pneg %p60
        %p363 = pneg %p57
        %s364 = sand.u32 %s27, 1
        %s365 = scalar_lea.sflag [#allocation8], %s364
        %s366 = sand.u32 %s73, 1
        %s367 = smul.addr %s366, 64
        %s368 = scalar_lea.vmem [#allocation7], %s367
        %p369 = pneg %p86
        %p370 = pneg %p83
        %p371 = scmp.lt.s32.totalorder %s32, 1
        %s372 = scalar_select %p371, %s32, 1
        %s373 = scalar_lea.vmem %s2, %s372
        %p374 = pneg %p112
        %p375 = pneg %p109
        %s376 = sand.u32 %s27, 1
        %s377 = scalar_lea.sflag [#allocation8], %s376
        %s378 = sand.u32 %s125, 1
        %s379 = smul.addr %s378, 64
        %s380 = scalar_lea.vmem [#allocation9], %s379
        %p381 = pneg %p138
        %p382 = pneg %p135
        %p383 = pneg %p159
        %p384 = pneg %p156
        %p385 = pneg %p180
        %p386 = pneg %p177
        %p387 = pneg %p201
        %p388 = pneg %p198
        %p389 = pneg %p227
        %p390 = pneg %p224
        %s391 = sand.u32 %s214, 1
        %s392 = scalar_lea.sflag [#allocation6], %s391
        %s393 = sand.u32 %s214, 1
        %s394 = smul.addr %s393, 128
        %s395 = scalar_lea.vmem [#allocation10], %s394
        %s396 = smul.u32 16, %s31
        %p397 = scmp.lt.s32.totalorder %s32, 1
        %s398 = scalar_select %p397, %s32, 1
        %s399 = scalar_lea.vmem %s2, %s398
        %s400 = smul.u32 16, %s32
        %s401 = smul.u32 16, %s31
        %p403 = scmp.eq.s32.totalorder %s32, 0
        // Predicated region
        $region61: #{_feed_forward_padded.1} parent=47 // pred_check
          %p404 = pneg %p403
        $region62: #{_feed_forward_padded.1} parent=47 // pred_check_branch
          %406 = sbr.rel (%p404) target = $region64
        $region63: #{_feed_forward_padded.1} parent=47 // pred_region
          %407 = vst [vmem:[#allocation3] sm:$0xff] 0.0
          %408 = vst [vmem:[#allocation3 + $0x8] sm:$0xff] 0.0
          %409 = vst [vmem:[#allocation3 + $0x10] sm:$0xff] 0.0
          %410 = vst [vmem:[#allocation3 + $0x18] sm:$0xff] 0.0
          %411 = vst [vmem:[#allocation3 + $0x20] sm:$0xff] 0.0
          %412 = vst [vmem:[#allocation3 + $0x28] sm:$0xff] 0.0
          %413 = vst [vmem:[#allocation3 + $0x30] sm:$0xff] 0.0
          %414 = vst [vmem:[#allocation3 + $0x38] sm:$0xff] 0.0
          %415 = vst [vmem:[#allocation3 + $0x40] sm:$0xff] 0.0
          %416 = vst [vmem:[#allocation3 + $0x48] sm:$0xff] 0.0
          %417 = vst [vmem:[#allocation3 + $0x50] sm:$0xff] 0.0
          %418 = vst [vmem:[#allocation3 + $0x58] sm:$0xff] 0.0
          %419 = vst [vmem:[#allocation3 + $0x60] sm:$0xff] 0.0
          %420 = vst [vmem:[#allocation3 + $0x68] sm:$0xff] 0.0
          %421 = vst [vmem:[#allocation3 + $0x70] sm:$0xff] 0.0
          %422 = vst [vmem:[#allocation3 + $0x78] sm:$0xff] 0.0
        $region64: #{_feed_forward_padded.1} parent=47 // pred_fallthru
          _
        %v423 = vld [vmem:[%s334] sm:$0xff]
        %v424 = vld [vmem:[%s334 + $0x8] sm:$0xff]
        %v425 = vld [vmem:[%s334 + $0x10] sm:$0xff]
        %v426 = vld [vmem:[%s334 + $0x18] sm:$0xff]
        %v427 = vld [vmem:[%s334 + $0x20] sm:$0xff]
        %v428 = vld [vmem:[%s334 + $0x28] sm:$0xff]
        %v429 = vld [vmem:[%s334 + $0x30] sm:$0xff]
        %v430 = vld [vmem:[%s334 + $0x38] sm:$0xff]
        %v431 = vld [vmem:[%s334 + $0x40] sm:$0xff]
        %v432 = vld [vmem:[%s334 + $0x48] sm:$0xff]
        %v433 = vld [vmem:[%s334 + $0x50] sm:$0xff]
        %v434 = vld [vmem:[%s334 + $0x58] sm:$0xff]
        %v435 = vld [vmem:[%s334 + $0x60] sm:$0xff]
        %v436 = vld [vmem:[%s334 + $0x68] sm:$0xff]
        %v437 = vld [vmem:[%s334 + $0x70] sm:$0xff]
        %v438 = vld [vmem:[%s334 + $0x78] sm:$0xff]
        %v439 = vpack.c.bf16 %v424, %v423
        %v440 = vpack.c.bf16 %v426, %v425
        %v441 = vpack.c.bf16 %v428, %v427
        %v442 = vpack.c.bf16 %v430, %v429
        %v443 = vpack.c.bf16 %v432, %v431
        %v444 = vpack.c.bf16 %v434, %v433
        %v445 = vpack.c.bf16 %v436, %v435
        %v446 = vpack.c.bf16 %v438, %v437
        %v447 = vld [vmem:[%s343] sm:$0xf]
        %v448 = vld [vmem:[%s343 + $0x4] sm:$0xf]
        %v449 = vld [vmem:[%s343 + $0x8] sm:$0xf]
        %v450 = vld [vmem:[%s343 + $0xc] sm:$0xf]
        %v451 = vld [vmem:[%s343 + $0x10] sm:$0xf]
        %v452 = vld [vmem:[%s343 + $0x14] sm:$0xf]
        %v453 = vld [vmem:[%s343 + $0x18] sm:$0xf]
        %v454 = vld [vmem:[%s343 + $0x1c] sm:$0xf]
        %v455 = vld [vmem:[%s343 + $0x20] sm:$0xf]
        %v456 = vld [vmem:[%s343 + $0x24] sm:$0xf]
        %v457 = vld [vmem:[%s343 + $0x28] sm:$0xf]
        %v458 = vld [vmem:[%s343 + $0x2c] sm:$0xf]
        %v459 = vld [vmem:[%s343 + $0x30] sm:$0xf]
        %v460 = vld [vmem:[%s343 + $0x34] sm:$0xf]
        %v461 = vld [vmem:[%s343 + $0x38] sm:$0xf]
        %v462 = vld [vmem:[%s343 + $0x3c] sm:$0xf]
        %v463 = vld [vmem:[%s399] sm:$0x1]
        %v465 = vlaneseq
        %v466 = vshrl.u32 %v465, 7
        %v467 = vsub.s32 0, %v466
        %v468 = vrot.slane %v463, %v467
        %v486 = vunpack.c.l.b16 %v447
        %v487 = vunpack.c.l.b16 %v448
        %v488 = vunpack.c.l.b16 %v449
        %v489 = vunpack.c.l.b16 %v450
        %v490 = vunpack.c.l.b16 %v451
        %v491 = vunpack.c.l.b16 %v452
        %v492 = vunpack.c.l.b16 %v453
        %v493 = vunpack.c.l.b16 %v454
        %v494 = vunpack.c.l.b16 %v455
        %v495 = vunpack.c.l.b16 %v456
        %v496 = vunpack.c.l.b16 %v457
        %v497 = vunpack.c.l.b16 %v458
        %v498 = vunpack.c.l.b16 %v459
        %v499 = vunpack.c.l.b16 %v460
        %v500 = vunpack.c.l.b16 %v461
        %v501 = vunpack.c.l.b16 %v462
        %v502 = vpack.c.b16 %v487, %v486
        %v503 = vpack.c.b16 %v489, %v488
        %v504 = vpack.c.b16 %v491, %v490
        %v505 = vpack.c.b16 %v493, %v492
        %v506 = vpack.c.b16 %v495, %v494
        %v507 = vpack.c.b16 %v497, %v496
        %v508 = vpack.c.b16 %v499, %v498
        %v509 = vpack.c.b16 %v501, %v500
        %518 = vmatprep.subr.bf16.mxu0 0
        %519 = vmatpush1.bf16.msra.mxu0 %v509
        %520 = vmatprep.subr.bf16.mxu0 0
        %521 = vmatpush1.bf16.msra.mxu0 %v508
        %522 = vmatprep.subr.bf16.mxu0 0
        %523 = vmatpush1.bf16.msra.mxu0 %v507
        %524 = vmatprep.subr.bf16.mxu0 0
        %525 = vmatpush1.bf16.msra.mxu0 %v506
        %526 = vmatprep.subr.bf16.mxu0 0
        %527 = vmatpush1.bf16.msra.mxu0 %v505
        %528 = vmatprep.subr.bf16.mxu0 0
        %529 = vmatpush1.bf16.msra.mxu0 %v504
        %530 = vmatprep.subr.bf16.mxu0 0
        %531 = vmatpush1.bf16.msra.mxu0 %v503
        %532 = vmatprep.subr.bf16.mxu0 0
        %533 = vmatpush1.bf16.msra.mxu0 %v502
        %534 = vmatprep.subr.bf16.mxu0 0
        %535 = vmatpush2.bf16.msra.mxu0 0
        %536 = vmatprep.subr.bf16.mxu0 0
        %537 = vmatpush2.bf16.msra.mxu0 0
        %538 = vmatprep.subr.bf16.mxu0 0
        %539 = vmatpush2.bf16.msra.mxu0 0
        %540 = vmatprep.subr.bf16.mxu0 0
        %541 = vmatpush2.bf16.msra.mxu0 0
        %542 = vmatprep.subr.bf16.mxu0 0
        %543 = vmatpush2.bf16.msra.mxu0 0
        %544 = vmatprep.subr.bf16.mxu0 0
        %545 = vmatpush2.bf16.msra.mxu0 0
        %546 = vmatprep.subr.bf16.mxu0 0
        %547 = vmatpush2.bf16.msra.mxu0 0
        %548 = vmatprep.subr.bf16.mxu0 0
        %549 = vmatpush2.bf16.msra.mxu0 0
        %550 = vmatprep.mubr.bf16.mxu0 0
        %551 = vmatmul.mubr.bf16.gmra.mxu0 %v439
        %v552 = vpop.f32.mrf.mxu0
        %v553 = vadd.f32 %v468, %v552
        %v554 = vpop.f32.mrf.mxu0
        %v555 = vpop.f32.mrf.mxu0
        %v556 = vadd.f32 %v468, %v555
        %v557 = vpop.f32.mrf.mxu0
        %558 = vmatprep.mubr.bf16.mxu0 0
        %559 = vmatmul.mubr.bf16.gmra.mxu0 %v440
        %v560 = vpop.f32.mrf.mxu0
        %v561 = vadd.f32 %v468, %v560
        %v562 = vpop.f32.mrf.mxu0
        %v563 = vpop.f32.mrf.mxu0
        %v564 = vadd.f32 %v468, %v563
        %v565 = vpop.f32.mrf.mxu0
        %566 = vmatprep.mubr.bf16.mxu0 0
        %567 = vmatmul.mubr.bf16.gmra.mxu0 %v441
        %v568 = vpop.f32.mrf.mxu0
        %v569 = vadd.f32 %v468, %v568
        %v570 = vpop.f32.mrf.mxu0
        %v571 = vpop.f32.mrf.mxu0
        %v572 = vadd.f32 %v468, %v571
        %v573 = vpop.f32.mrf.mxu0
        %574 = vmatprep.mubr.bf16.mxu0 0
        %575 = vmatmul.mubr.bf16.gmra.mxu0 %v442
        %v576 = vpop.f32.mrf.mxu0
        %v577 = vadd.f32 %v468, %v576
        %v578 = vpop.f32.mrf.mxu0
        %v579 = vpop.f32.mrf.mxu0
        %v580 = vadd.f32 %v468, %v579
        %v581 = vpop.f32.mrf.mxu0
        %582 = vmatprep.mubr.bf16.mxu0 0
        %583 = vmatmul.mubr.bf16.gmra.mxu0 %v443
        %v584 = vpop.f32.mrf.mxu0
        %v585 = vadd.f32 %v468, %v584
        %v586 = vpop.f32.mrf.mxu0
        %v587 = vpop.f32.mrf.mxu0
        %v588 = vadd.f32 %v468, %v587
        %v589 = vpop.f32.mrf.mxu0
        %590 = vmatprep.mubr.bf16.mxu0 0
        %591 = vmatmul.mubr.bf16.gmra.mxu0 %v444
        %v592 = vpop.f32.mrf.mxu0
        %v593 = vadd.f32 %v468, %v592
        %v594 = vpop.f32.mrf.mxu0
        %v595 = vpop.f32.mrf.mxu0
        %v596 = vadd.f32 %v468, %v595
        %v597 = vpop.f32.mrf.mxu0
        %598 = vmatprep.mubr.bf16.mxu0 0
        %599 = vmatmul.mubr.bf16.gmra.mxu0 %v445
        %v600 = vpop.f32.mrf.mxu0
        %v601 = vadd.f32 %v468, %v600
        %v602 = vpop.f32.mrf.mxu0
        %v603 = vpop.f32.mrf.mxu0
        %v604 = vadd.f32 %v468, %v603
        %v605 = vpop.f32.mrf.mxu0
        %606 = vmatprep.mubr.bf16.mxu0 0
        %607 = vmatmul.mubr.bf16.gmra.mxu0 %v446
        %v608 = vpop.f32.mrf.mxu0
        %v609 = vadd.f32 %v468, %v608
        %v610 = vpop.f32.mrf.mxu0
        %v611 = vpop.f32.mrf.mxu0
        %v612 = vadd.f32 %v468, %v611
        %v613 = vpop.f32.mrf.mxu0
        %614 = vdwg.mxu0
        %v615 = vmul.f32 %v553, 0.5
        %v616 = vmul.f32 %v556, 0.5
        %v617 = vmul.f32 %v561, 0.5
        %v618 = vmul.f32 %v564, 0.5
        %v619 = vmul.f32 %v569, 0.5
        %v620 = vmul.f32 %v572, 0.5
        %v621 = vmul.f32 %v577, 0.5
        %v622 = vmul.f32 %v580, 0.5
        %v623 = vmul.f32 %v585, 0.5
        %v624 = vmul.f32 %v588, 0.5
        %v625 = vmul.f32 %v593, 0.5
        %v626 = vmul.f32 %v596, 0.5
        %v627 = vmul.f32 %v601, 0.5
        %v628 = vmul.f32 %v604, 0.5
        %v629 = vmul.f32 %v609, 0.5
        %v630 = vmul.f32 %v612, 0.5
        %v631 = vmul.f32 %v553, 0.044715
        %v632 = vmul.f32 %v556, 0.044715
        %v633 = vmul.f32 %v561, 0.044715
        %v634 = vmul.f32 %v564, 0.044715
        %v635 = vmul.f32 %v569, 0.044715
        %v636 = vmul.f32 %v572, 0.044715
        %v637 = vmul.f32 %v577, 0.044715
        %v638 = vmul.f32 %v580, 0.044715
        %v639 = vmul.f32 %v585, 0.044715
        %v640 = vmul.f32 %v588, 0.044715
        %v641 = vmul.f32 %v593, 0.044715
        %v642 = vmul.f32 %v596, 0.044715
        %v643 = vmul.f32 %v601, 0.044715
        %v644 = vmul.f32 %v604, 0.044715
        %v645 = vmul.f32 %v609, 0.044715
        %v646 = vmul.f32 %v612, 0.044715
        %v647 = vmul.f32 %v631, %v553
        %v648 = vmul.f32 %v632, %v556
        %v649 = vmul.f32 %v633, %v561
        %v650 = vmul.f32 %v634, %v564
        %v651 = vmul.f32 %v635, %v569
        %v652 = vmul.f32 %v636, %v572
        %v653 = vmul.f32 %v637, %v577
        %v654 = vmul.f32 %v638, %v580
        %v655 = vmul.f32 %v639, %v585
        %v656 = vmul.f32 %v640, %v588
        %v657 = vmul.f32 %v641, %v593
        %v658 = vmul.f32 %v642, %v596
        %v659 = vmul.f32 %v643, %v601
        %v660 = vmul.f32 %v644, %v604
        %v661 = vmul.f32 %v645, %v609
        %v662 = vmul.f32 %v646, %v612
        %v663 = vmul.f32 %v647, %v553
        %v664 = vmul.f32 %v648, %v556
        %v665 = vmul.f32 %v649, %v561
        %v666 = vmul.f32 %v650, %v564
        %v667 = vmul.f32 %v651, %v569
        %v668 = vmul.f32 %v652, %v572
        %v669 = vmul.f32 %v653, %v577
        %v670 = vmul.f32 %v654, %v580
        %v671 = vmul.f32 %v655, %v585
        %v672 = vmul.f32 %v656, %v588
        %v673 = vmul.f32 %v657, %v593
        %v674 = vmul.f32 %v658, %v596
        %v675 = vmul.f32 %v659, %v601
        %v676 = vmul.f32 %v660, %v604
        %v677 = vmul.f32 %v661, %v609
        %v678 = vmul.f32 %v662, %v612
        %v679 = vadd.f32 %v553, %v663
        %v680 = vadd.f32 %v556, %v664
        %v681 = vadd.f32 %v561, %v665
        %v682 = vadd.f32 %v564, %v666
        %v683 = vadd.f32 %v569, %v667
        %v684 = vadd.f32 %v572, %v668
        %v685 = vadd.f32 %v577, %v669
        %v686 = vadd.f32 %v580, %v670
        %v687 = vadd.f32 %v585, %v671
        %v688 = vadd.f32 %v588, %v672
        %v689 = vadd.f32 %v593, %v673
        %v690 = vadd.f32 %v596, %v674
        %v691 = vadd.f32 %v601, %v675
        %v692 = vadd.f32 %v604, %v676
        %v693 = vadd.f32 %v609, %v677
        %v694 = vadd.f32 %v612, %v678
        %v695 = vmul.f32 %v679, 0.7978846
        %v696 = vmul.f32 %v680, 0.7978846
        %v697 = vmul.f32 %v681, 0.7978846
        %v698 = vmul.f32 %v682, 0.7978846
        %v699 = vmul.f32 %v683, 0.7978846
        %v700 = vmul.f32 %v684, 0.7978846
        %v701 = vmul.f32 %v685, 0.7978846
        %v702 = vmul.f32 %v686, 0.7978846
        %v703 = vmul.f32 %v687, 0.7978846
        %v704 = vmul.f32 %v688, 0.7978846
        %v705 = vmul.f32 %v689, 0.7978846
        %v706 = vmul.f32 %v690, 0.7978846
        %v707 = vmul.f32 %v691, 0.7978846
        %v708 = vmul.f32 %v692, 0.7978846
        %v709 = vmul.f32 %v693, 0.7978846
        %v710 = vmul.f32 %v694, 0.7978846
        %v711 = vtanh.pop %v695
        %v712 = vtanh.pop %v696
        %v713 = vtanh.pop %v697
        %v714 = vtanh.pop %v698
        %v715 = vtanh.pop %v699
        %v716 = vtanh.pop %v700
        %v717 = vtanh.pop %v701
        %v718 = vtanh.pop %v702
        %v719 = vtanh.pop %v703
        %v720 = vtanh.pop %v704
        %v721 = vtanh.pop %v705
        %v722 = vtanh.pop %v706
        %v723 = vtanh.pop %v707
        %v724 = vtanh.pop %v708
        %v725 = vtanh.pop %v709
        %v726 = vtanh.pop %v710
        %v727 = vadd.f32 %v711, 1.0
        %v728 = vadd.f32 %v712, 1.0
        %v729 = vadd.f32 %v713, 1.0
        %v730 = vadd.f32 %v714, 1.0
        %v731 = vadd.f32 %v715, 1.0
        %v732 = vadd.f32 %v716, 1.0
        %v733 = vadd.f32 %v717, 1.0
        %v734 = vadd.f32 %v718, 1.0
        %v735 = vadd.f32 %v719, 1.0
        %v736 = vadd.f32 %v720, 1.0
        %v737 = vadd.f32 %v721, 1.0
        %v738 = vadd.f32 %v722, 1.0
        %v739 = vadd.f32 %v723, 1.0
        %v740 = vadd.f32 %v724, 1.0
        %v741 = vadd.f32 %v725, 1.0
        %v742 = vadd.f32 %v726, 1.0
        %v743 = vmul.f32 %v615, %v727
        %v744 = vmul.f32 %v616, %v728
        %v745 = vmul.f32 %v617, %v729
        %v746 = vmul.f32 %v618, %v730
        %v747 = vmul.f32 %v619, %v731
        %v748 = vmul.f32 %v620, %v732
        %v749 = vmul.f32 %v621, %v733
        %v750 = vmul.f32 %v622, %v734
        %v751 = vmul.f32 %v623, %v735
        %v752 = vmul.f32 %v624, %v736
        %v753 = vmul.f32 %v625, %v737
        %v754 = vmul.f32 %v626, %v738
        %v755 = vmul.f32 %v627, %v739
        %v756 = vmul.f32 %v628, %v740
        %v757 = vmul.f32 %v629, %v741
        %v758 = vmul.f32 %v630, %v742
        %v759 = vpack.c.bf16 %v744, %v743
        %v760 = vpack.c.bf16 %v746, %v745
        %v761 = vpack.c.bf16 %v748, %v747
        %v762 = vpack.c.bf16 %v750, %v749
        %v763 = vpack.c.bf16 %v752, %v751
        %v764 = vpack.c.bf16 %v754, %v753
        %v765 = vpack.c.bf16 %v756, %v755
        %v766 = vpack.c.bf16 %v758, %v757
        %v775 = vunpack.c.l.b16 %v759
        %v776 = vunpack.c.h.b16 %v759
        %v777 = vunpack.c.l.b16 %v760
        %v778 = vunpack.c.h.b16 %v760
        %v779 = vunpack.c.l.b16 %v761
        %v780 = vunpack.c.h.b16 %v761
        %v781 = vunpack.c.l.b16 %v762
        %v782 = vunpack.c.h.b16 %v762
        %v783 = vunpack.c.l.b16 %v763
        %v784 = vunpack.c.h.b16 %v763
        %v785 = vunpack.c.l.b16 %v764
        %v786 = vunpack.c.h.b16 %v764
        %v787 = vunpack.c.l.b16 %v765
        %v788 = vunpack.c.h.b16 %v765
        %v789 = vunpack.c.l.b16 %v766
        %v790 = vunpack.c.h.b16 %v766
        %v791 = vpack.c.b16 %v775, %v775
        %v792 = vpack.c.b16 %v776, %v776
        %v793 = vpack.c.b16 %v777, %v777
        %v794 = vpack.c.b16 %v778, %v778
        %v795 = vpack.c.b16 %v779, %v779
        %v796 = vpack.c.b16 %v780, %v780
        %v797 = vpack.c.b16 %v781, %v781
        %v798 = vpack.c.b16 %v782, %v782
        %v799 = vpack.c.b16 %v783, %v783
        %v800 = vpack.c.b16 %v784, %v784
        %v801 = vpack.c.b16 %v785, %v785
        %v802 = vpack.c.b16 %v786, %v786
        %v803 = vpack.c.b16 %v787, %v787
        %v804 = vpack.c.b16 %v788, %v788
        %v805 = vpack.c.b16 %v789, %v789
        %v806 = vpack.c.b16 %v790, %v790
        %823 = vst [vmem:[#allocation2] sm:$0xf] %v791
        %824 = vst [vmem:[#allocation2 + $0x4] sm:$0xf] %v792
        %825 = vst [vmem:[#allocation2 + $0x8] sm:$0xf] %v793
        %826 = vst [vmem:[#allocation2 + $0xc] sm:$0xf] %v794
        %827 = vst [vmem:[#allocation2 + $0x10] sm:$0xf] %v795
        %828 = vst [vmem:[#allocation2 + $0x14] sm:$0xf] %v796
        %829 = vst [vmem:[#allocation2 + $0x18] sm:$0xf] %v797
        %830 = vst [vmem:[#allocation2 + $0x1c] sm:$0xf] %v798
        %831 = vst [vmem:[#allocation2 + $0x20] sm:$0xf] %v799
        %832 = vst [vmem:[#allocation2 + $0x24] sm:$0xf] %v800
        %833 = vst [vmem:[#allocation2 + $0x28] sm:$0xf] %v801
        %834 = vst [vmem:[#allocation2 + $0x2c] sm:$0xf] %v802
        %835 = vst [vmem:[#allocation2 + $0x30] sm:$0xf] %v803
        %836 = vst [vmem:[#allocation2 + $0x34] sm:$0xf] %v804
        %837 = vst [vmem:[#allocation2 + $0x38] sm:$0xf] %v805
        %838 = vst [vmem:[#allocation2 + $0x3c] sm:$0xf] %v806
        %v839 = vld [vmem:[#allocation3] sm:$0xff]
        %v840 = vld [vmem:[#allocation3 + $0x8] sm:$0xff]
        %v841 = vld [vmem:[#allocation3 + $0x10] sm:$0xff]
        %v842 = vld [vmem:[#allocation3 + $0x18] sm:$0xff]
        %v843 = vld [vmem:[#allocation3 + $0x20] sm:$0xff]
        %v844 = vld [vmem:[#allocation3 + $0x28] sm:$0xff]
        %v845 = vld [vmem:[#allocation3 + $0x30] sm:$0xff]
        %v846 = vld [vmem:[#allocation3 + $0x38] sm:$0xff]
        %v847 = vld [vmem:[#allocation3 + $0x40] sm:$0xff]
        %v848 = vld [vmem:[#allocation3 + $0x48] sm:$0xff]
        %v849 = vld [vmem:[#allocation3 + $0x50] sm:$0xff]
        %v850 = vld [vmem:[#allocation3 + $0x58] sm:$0xff]
        %v851 = vld [vmem:[#allocation3 + $0x60] sm:$0xff]
        %v852 = vld [vmem:[#allocation3 + $0x68] sm:$0xff]
        %v853 = vld [vmem:[#allocation3 + $0x70] sm:$0xff]
        %v854 = vld [vmem:[#allocation3 + $0x78] sm:$0xff]
        %v855 = vld [vmem:[#allocation2] sm:$0xf]
        %v856 = vld [vmem:[#allocation2 + $0x4] sm:$0xf]
        %v857 = vld [vmem:[#allocation2 + $0x8] sm:$0xf]
        %v858 = vld [vmem:[#allocation2 + $0xc] sm:$0xf]
        %v859 = vld [vmem:[#allocation2 + $0x10] sm:$0xf]
        %v860 = vld [vmem:[#allocation2 + $0x14] sm:$0xf]
        %v861 = vld [vmem:[#allocation2 + $0x18] sm:$0xf]
        %v862 = vld [vmem:[#allocation2 + $0x1c] sm:$0xf]
        %v863 = vld [vmem:[#allocation2 + $0x20] sm:$0xf]
        %v864 = vld [vmem:[#allocation2 + $0x24] sm:$0xf]
        %v865 = vld [vmem:[#allocation2 + $0x28] sm:$0xf]
        %v866 = vld [vmem:[#allocation2 + $0x2c] sm:$0xf]
        %v867 = vld [vmem:[#allocation2 + $0x30] sm:$0xf]
        %v868 = vld [vmem:[#allocation2 + $0x34] sm:$0xf]
        %v869 = vld [vmem:[#allocation2 + $0x38] sm:$0xf]
        %v870 = vld [vmem:[#allocation2 + $0x3c] sm:$0xf]
        %v871 = vld [vmem:[%s352] sm:$0xf]
        %v872 = vld [vmem:[%s352 + $0x4] sm:$0xf]
        %v873 = vld [vmem:[%s352 + $0x8] sm:$0xf]
        %v874 = vld [vmem:[%s352 + $0xc] sm:$0xf]
        %v875 = vld [vmem:[%s352 + $0x10] sm:$0xf]
        %v876 = vld [vmem:[%s352 + $0x14] sm:$0xf]
        %v877 = vld [vmem:[%s352 + $0x18] sm:$0xf]
        %v878 = vld [vmem:[%s352 + $0x1c] sm:$0xf]
        %v879 = vld [vmem:[%s352 + $0x20] sm:$0xf]
        %v880 = vld [vmem:[%s352 + $0x24] sm:$0xf]
        %v881 = vld [vmem:[%s352 + $0x28] sm:$0xf]
        %v882 = vld [vmem:[%s352 + $0x2c] sm:$0xf]
        %v883 = vld [vmem:[%s352 + $0x30] sm:$0xf]
        %v884 = vld [vmem:[%s352 + $0x34] sm:$0xf]
        %v885 = vld [vmem:[%s352 + $0x38] sm:$0xf]
        %v886 = vld [vmem:[%s352 + $0x3c] sm:$0xf]
        %v903 = vunpack.c.l.b16 %v855
        %v904 = vunpack.c.l.b16 %v856
        %v905 = vunpack.c.l.b16 %v857
        %v906 = vunpack.c.l.b16 %v858
        %v907 = vunpack.c.l.b16 %v859
        %v908 = vunpack.c.l.b16 %v860
        %v909 = vunpack.c.l.b16 %v861
        %v910 = vunpack.c.l.b16 %v862
        %v911 = vunpack.c.l.b16 %v863
        %v912 = vunpack.c.l.b16 %v864
        %v913 = vunpack.c.l.b16 %v865
        %v914 = vunpack.c.l.b16 %v866
        %v915 = vunpack.c.l.b16 %v867
        %v916 = vunpack.c.l.b16 %v868
        %v917 = vunpack.c.l.b16 %v869
        %v918 = vunpack.c.l.b16 %v870
        %v919 = vpack.c.b16 %v904, %v903
        %v920 = vpack.c.b16 %v906, %v905
        %v921 = vpack.c.b16 %v908, %v907
        %v922 = vpack.c.b16 %v910, %v909
        %v923 = vpack.c.b16 %v912, %v911
        %v924 = vpack.c.b16 %v914, %v913
        %v925 = vpack.c.b16 %v916, %v915
        %v926 = vpack.c.b16 %v918, %v917
        %v951 = vunpack.c.l.b16 %v871
        %v952 = vunpack.c.l.b16 %v872
        %v953 = vunpack.c.l.b16 %v873
        %v954 = vunpack.c.l.b16 %v874
        %v955 = vunpack.c.l.b16 %v875
        %v956 = vunpack.c.l.b16 %v876
        %v957 = vunpack.c.l.b16 %v877
        %v958 = vunpack.c.l.b16 %v878
        %v959 = vunpack.c.l.b16 %v879
        %v960 = vunpack.c.l.b16 %v880
        %v961 = vunpack.c.l.b16 %v881
        %v962 = vunpack.c.l.b16 %v882
        %v963 = vunpack.c.l.b16 %v883
        %v964 = vunpack.c.l.b16 %v884
        %v965 = vunpack.c.l.b16 %v885
        %v966 = vunpack.c.l.b16 %v886
        %v967 = vpack.c.b16 %v952, %v951
        %v968 = vpack.c.b16 %v954, %v953
        %v969 = vpack.c.b16 %v956, %v955
        %v970 = vpack.c.b16 %v958, %v957
        %v971 = vpack.c.b16 %v960, %v959
        %v972 = vpack.c.b16 %v962, %v961
        %v973 = vpack.c.b16 %v964, %v963
        %v974 = vpack.c.b16 %v966, %v965
        %983 = vmatprep.subr.bf16.mxu0 0
        %984 = vmatpush1.bf16.msra.mxu0 %v974
        %985 = vmatprep.subr.bf16.mxu0 0
        %986 = vmatpush1.bf16.msra.mxu0 %v973
        %987 = vmatprep.subr.bf16.mxu0 0
        %988 = vmatpush1.bf16.msra.mxu0 %v972
        %989 = vmatprep.subr.bf16.mxu0 0
        %990 = vmatpush1.bf16.msra.mxu0 %v971
        %991 = vmatprep.subr.bf16.mxu0 0
        %992 = vmatpush1.bf16.msra.mxu0 %v970
        %993 = vmatprep.subr.bf16.mxu0 0
        %994 = vmatpush1.bf16.msra.mxu0 %v969
        %995 = vmatprep.subr.bf16.mxu0 0
        %996 = vmatpush1.bf16.msra.mxu0 %v968
        %997 = vmatprep.subr.bf16.mxu0 0
        %998 = vmatpush1.bf16.msra.mxu0 %v967
        %999 = vmatprep.subr.bf16.mxu0 0
        %1000 = vmatpush2.bf16.msra.mxu0 0
        %1001 = vmatprep.subr.bf16.mxu0 0
        %1002 = vmatpush2.bf16.msra.mxu0 0
        %1003 = vmatprep.subr.bf16.mxu0 0
        %1004 = vmatpush2.bf16.msra.mxu0 0
        %1005 = vmatprep.subr.bf16.mxu0 0
        %1006 = vmatpush2.bf16.msra.mxu0 0
        %1007 = vmatprep.subr.bf16.mxu0 0
        %1008 = vmatpush2.bf16.msra.mxu0 0
        %1009 = vmatprep.subr.bf16.mxu0 0
        %1010 = vmatpush2.bf16.msra.mxu0 0
        %1011 = vmatprep.subr.bf16.mxu0 0
        %1012 = vmatpush2.bf16.msra.mxu0 0
        %1013 = vmatprep.subr.bf16.mxu0 0
        %1014 = vmatpush2.bf16.msra.mxu0 0
        %1015 = vmatprep.mubr.bf16.mxu0 0
        %1016 = vmatmul.mubr.bf16.gmra.mxu0 %v919
        %v1017 = vpop.f32.mrf.mxu0
        %v1018 = vadd.f32 0.0, %v1017
        %v1019 = vpop.f32.mrf.mxu0
        %v1020 = vpop.f32.mrf.mxu0
        %v1021 = vadd.f32 0.0, %v1020
        %v1022 = vpop.f32.mrf.mxu0
        %1023 = vmatprep.mubr.bf16.mxu0 0
        %1024 = vmatmul.mubr.bf16.gmra.mxu0 %v920
        %v1025 = vpop.f32.mrf.mxu0
        %v1026 = vadd.f32 0.0, %v1025
        %v1027 = vpop.f32.mrf.mxu0
        %v1028 = vpop.f32.mrf.mxu0
        %v1029 = vadd.f32 0.0, %v1028
        %v1030 = vpop.f32.mrf.mxu0
        %1031 = vmatprep.mubr.bf16.mxu0 0
        %1032 = vmatmul.mubr.bf16.gmra.mxu0 %v921
        %v1033 = vpop.f32.mrf.mxu0
        %v1034 = vadd.f32 0.0, %v1033
        %v1035 = vpop.f32.mrf.mxu0
        %v1036 = vpop.f32.mrf.mxu0
        %v1037 = vadd.f32 0.0, %v1036
        %v1038 = vpop.f32.mrf.mxu0
        %1039 = vmatprep.mubr.bf16.mxu0 0
        %1040 = vmatmul.mubr.bf16.gmra.mxu0 %v922
        %v1041 = vpop.f32.mrf.mxu0
        %v1042 = vadd.f32 0.0, %v1041
        %v1043 = vpop.f32.mrf.mxu0
        %v1044 = vpop.f32.mrf.mxu0
        %v1045 = vadd.f32 0.0, %v1044
        %v1046 = vpop.f32.mrf.mxu0
        %1047 = vmatprep.mubr.bf16.mxu0 0
        %1048 = vmatmul.mubr.bf16.gmra.mxu0 %v923
        %v1049 = vpop.f32.mrf.mxu0
        %v1050 = vadd.f32 0.0, %v1049
        %v1051 = vpop.f32.mrf.mxu0
        %v1052 = vpop.f32.mrf.mxu0
        %v1053 = vadd.f32 0.0, %v1052
        %v1054 = vpop.f32.mrf.mxu0
        %1055 = vmatprep.mubr.bf16.mxu0 0
        %1056 = vmatmul.mubr.bf16.gmra.mxu0 %v924
        %v1057 = vpop.f32.mrf.mxu0
        %v1058 = vadd.f32 0.0, %v1057
        %v1059 = vpop.f32.mrf.mxu0
        %v1060 = vpop.f32.mrf.mxu0
        %v1061 = vadd.f32 0.0, %v1060
        %v1062 = vpop.f32.mrf.mxu0
        %1063 = vmatprep.mubr.bf16.mxu0 0
        %1064 = vmatmul.mubr.bf16.gmra.mxu0 %v925
        %v1065 = vpop.f32.mrf.mxu0
        %v1066 = vadd.f32 0.0, %v1065
        %v1067 = vpop.f32.mrf.mxu0
        %v1068 = vpop.f32.mrf.mxu0
        %v1069 = vadd.f32 0.0, %v1068
        %v1070 = vpop.f32.mrf.mxu0
        %1071 = vmatprep.mubr.bf16.mxu0 0
        %1072 = vmatmul.mubr.bf16.gmra.mxu0 %v926
        %v1073 = vpop.f32.mrf.mxu0
        %v1074 = vadd.f32 0.0, %v1073
        %v1075 = vpop.f32.mrf.mxu0
        %v1076 = vpop.f32.mrf.mxu0
        %v1077 = vadd.f32 0.0, %v1076
        %v1078 = vpop.f32.mrf.mxu0
        %1079 = vdwg.mxu0
        %v1080 = vadd.f32 %v839, %v1018
        %v1081 = vadd.f32 %v840, %v1021
        %v1082 = vadd.f32 %v841, %v1026
        %v1083 = vadd.f32 %v842, %v1029
        %v1084 = vadd.f32 %v843, %v1034
        %v1085 = vadd.f32 %v844, %v1037
        %v1086 = vadd.f32 %v845, %v1042
        %v1087 = vadd.f32 %v846, %v1045
        %v1088 = vadd.f32 %v847, %v1050
        %v1089 = vadd.f32 %v848, %v1053
        %v1090 = vadd.f32 %v849, %v1058
        %v1091 = vadd.f32 %v850, %v1061
        %v1092 = vadd.f32 %v851, %v1066
        %v1093 = vadd.f32 %v852, %v1069
        %v1094 = vadd.f32 %v853, %v1074
        %v1095 = vadd.f32 %v854, %v1077
        %1096 = vst [vmem:[#allocation3] sm:$0xff] %v1080
        %1097 = vst [vmem:[#allocation3 + $0x8] sm:$0xff] %v1081
        %1098 = vst [vmem:[#allocation3 + $0x10] sm:$0xff] %v1082
        %1099 = vst [vmem:[#allocation3 + $0x18] sm:$0xff] %v1083
        %1100 = vst [vmem:[#allocation3 + $0x20] sm:$0xff] %v1084
        %1101 = vst [vmem:[#allocation3 + $0x28] sm:$0xff] %v1085
        %1102 = vst [vmem:[#allocation3 + $0x30] sm:$0xff] %v1086
        %1103 = vst [vmem:[#allocation3 + $0x38] sm:$0xff] %v1087
        %1104 = vst [vmem:[#allocation3 + $0x40] sm:$0xff] %v1088
        %1105 = vst [vmem:[#allocation3 + $0x48] sm:$0xff] %v1089
        %1106 = vst [vmem:[#allocation3 + $0x50] sm:$0xff] %v1090
        %1107 = vst [vmem:[#allocation3 + $0x58] sm:$0xff] %v1091
        %1108 = vst [vmem:[#allocation3 + $0x60] sm:$0xff] %v1092
        %1109 = vst [vmem:[#allocation3 + $0x68] sm:$0xff] %v1093
        %1110 = vst [vmem:[#allocation3 + $0x70] sm:$0xff] %v1094
        %1111 = vst [vmem:[#allocation3 + $0x78] sm:$0xff] %v1095
        %p1112 = scmp.eq.s32.totalorder %s32, 1
        // Predicated region
        $region65: #{_feed_forward_padded.1} parent=47 // pred_check
          %p1113 = pneg %p1112
        $region66: #{_feed_forward_padded.1} parent=47 // pred_check_branch
          %1115 = sbr.rel (%p1113) target = $region68
        $region67: #{_feed_forward_padded.1} parent=47 // pred_region
          %v1116 = vld [vmem:[%s334] sm:$0xff]
          %v1117 = vld [vmem:[%s334 + $0x8] sm:$0xff]
          %v1118 = vld [vmem:[%s334 + $0x10] sm:$0xff]
          %v1119 = vld [vmem:[%s334 + $0x18] sm:$0xff]
          %v1120 = vld [vmem:[%s334 + $0x20] sm:$0xff]
          %v1121 = vld [vmem:[%s334 + $0x28] sm:$0xff]
          %v1122 = vld [vmem:[%s334 + $0x30] sm:$0xff]
          %v1123 = vld [vmem:[%s334 + $0x38] sm:$0xff]
          %v1124 = vld [vmem:[%s334 + $0x40] sm:$0xff]
          %v1125 = vld [vmem:[%s334 + $0x48] sm:$0xff]
          %v1126 = vld [vmem:[%s334 + $0x50] sm:$0xff]
          %v1127 = vld [vmem:[%s334 + $0x58] sm:$0xff]
          %v1128 = vld [vmem:[%s334 + $0x60] sm:$0xff]
          %v1129 = vld [vmem:[%s334 + $0x68] sm:$0xff]
          %v1130 = vld [vmem:[%s334 + $0x70] sm:$0xff]
          %v1131 = vld [vmem:[%s334 + $0x78] sm:$0xff]
          %v1132 = vld [vmem:[#allocation3] sm:$0xff]
          %v1133 = vld [vmem:[#allocation3 + $0x8] sm:$0xff]
          %v1134 = vld [vmem:[#allocation3 + $0x10] sm:$0xff]
          %v1135 = vld [vmem:[#allocation3 + $0x18] sm:$0xff]
          %v1136 = vld [vmem:[#allocation3 + $0x20] sm:$0xff]
          %v1137 = vld [vmem:[#allocation3 + $0x28] sm:$0xff]
          %v1138 = vld [vmem:[#allocation3 + $0x30] sm:$0xff]
          %v1139 = vld [vmem:[#allocation3 + $0x38] sm:$0xff]
          %v1140 = vld [vmem:[#allocation3 + $0x40] sm:$0xff]
          %v1141 = vld [vmem:[#allocation3 + $0x48] sm:$0xff]
          %v1142 = vld [vmem:[#allocation3 + $0x50] sm:$0xff]
          %v1143 = vld [vmem:[#allocation3 + $0x58] sm:$0xff]
          %v1144 = vld [vmem:[#allocation3 + $0x60] sm:$0xff]
          %v1145 = vld [vmem:[#allocation3 + $0x68] sm:$0xff]
          %v1146 = vld [vmem:[#allocation3 + $0x70] sm:$0xff]
          %v1147 = vld [vmem:[#allocation3 + $0x78] sm:$0xff]
          %v1148 = vadd.f32 %v1116, %v1132
          %v1149 = vadd.f32 %v1117, %v1133
          %v1150 = vadd.f32 %v1118, %v1134
          %v1151 = vadd.f32 %v1119, %v1135
          %v1152 = vadd.f32 %v1120, %v1136
          %v1153 = vadd.f32 %v1121, %v1137
          %v1154 = vadd.f32 %v1122, %v1138
          %v1155 = vadd.f32 %v1123, %v1139
          %v1156 = vadd.f32 %v1124, %v1140
          %v1157 = vadd.f32 %v1125, %v1141
          %v1158 = vadd.f32 %v1126, %v1142
          %v1159 = vadd.f32 %v1127, %v1143
          %v1160 = vadd.f32 %v1128, %v1144
          %v1161 = vadd.f32 %v1129, %v1145
          %v1162 = vadd.f32 %v1130, %v1146
          %v1163 = vadd.f32 %v1131, %v1147
          %v1164 = vld [vmem:[%s4] sm:$0x1]
          %v1166 = vlaneseq
          %v1167 = vshrl.u32 %v1166, 7
          %v1168 = vsub.s32 0, %v1167
          %v1169 = vrot.slane %v1164, %v1168
          %v1171 = vadd.f32 %v1148, %v1169
          %v1172 = vadd.f32 %v1149, %v1169
          %v1173 = vadd.f32 %v1150, %v1169
          %v1174 = vadd.f32 %v1151, %v1169
          %v1175 = vadd.f32 %v1152, %v1169
          %v1176 = vadd.f32 %v1153, %v1169
          %v1177 = vadd.f32 %v1154, %v1169
          %v1178 = vadd.f32 %v1155, %v1169
          %v1179 = vadd.f32 %v1156, %v1169
          %v1180 = vadd.f32 %v1157, %v1169
          %v1181 = vadd.f32 %v1158, %v1169
          %v1182 = vadd.f32 %v1159, %v1169
          %v1183 = vadd.f32 %v1160, %v1169
          %v1184 = vadd.f32 %v1161, %v1169
          %v1185 = vadd.f32 %v1162, %v1169
          %v1186 = vadd.f32 %v1163, %v1169
          %1187 = vadd.xlane.f32.xlu0 %v1171
          %v1188 = vpop.xlane.xlu0 %1187
          %1189 = vadd.xlane.f32.xlu0 %v1172
          %v1190 = vpop.xlane.xlu0 %1189
          %1191 = vadd.xlane.f32.xlu0 %v1173
          %v1192 = vpop.xlane.xlu0 %1191
          %1193 = vadd.xlane.f32.xlu0 %v1174
          %v1194 = vpop.xlane.xlu0 %1193
          %1195 = vadd.xlane.f32.xlu0 %v1175
          %v1196 = vpop.xlane.xlu0 %1195
          %1197 = vadd.xlane.f32.xlu0 %v1176
          %v1198 = vpop.xlane.xlu0 %1197
          %1199 = vadd.xlane.f32.xlu0 %v1177
          %v1200 = vpop.xlane.xlu0 %1199
          %1201 = vadd.xlane.f32.xlu0 %v1178
          %v1202 = vpop.xlane.xlu0 %1201
          %1203 = vadd.xlane.f32.xlu0 %v1179
          %v1204 = vpop.xlane.xlu0 %1203
          %1205 = vadd.xlane.f32.xlu0 %v1180
          %v1206 = vpop.xlane.xlu0 %1205
          %1207 = vadd.xlane.f32.xlu0 %v1181
          %v1208 = vpop.xlane.xlu0 %1207
          %1209 = vadd.xlane.f32.xlu0 %v1182
          %v1210 = vpop.xlane.xlu0 %1209
          %1211 = vadd.xlane.f32.xlu0 %v1183
          %v1212 = vpop.xlane.xlu0 %1211
          %1213 = vadd.xlane.f32.xlu0 %v1184
          %v1214 = vpop.xlane.xlu0 %1213
          %1215 = vadd.xlane.f32.xlu0 %v1185
          %v1216 = vpop.xlane.xlu0 %1215
          %1217 = vadd.xlane.f32.xlu0 %v1186
          %v1218 = vpop.xlane.xlu0 %1217
          %v1219 = vrcp.pop 128.0
          %v1220 = vmul.f32 %v1188, %v1219
          %v1221 = vmul.f32 %v1190, %v1219
          %v1222 = vmul.f32 %v1192, %v1219
          %v1223 = vmul.f32 %v1194, %v1219
          %v1224 = vmul.f32 %v1196, %v1219
          %v1225 = vmul.f32 %v1198, %v1219
          %v1226 = vmul.f32 %v1200, %v1219
          %v1227 = vmul.f32 %v1202, %v1219
          %v1228 = vmul.f32 %v1204, %v1219
          %v1229 = vmul.f32 %v1206, %v1219
          %v1230 = vmul.f32 %v1208, %v1219
          %v1231 = vmul.f32 %v1210, %v1219
          %v1232 = vmul.f32 %v1212, %v1219
          %v1233 = vmul.f32 %v1214, %v1219
          %v1234 = vmul.f32 %v1216, %v1219
          %v1235 = vmul.f32 %v1218, %v1219
          %v1236 = vsub.f32 %v1171, %v1220
          %v1237 = vsub.f32 %v1172, %v1221
          %v1238 = vsub.f32 %v1173, %v1222
          %v1239 = vsub.f32 %v1174, %v1223
          %v1240 = vsub.f32 %v1175, %v1224
          %v1241 = vsub.f32 %v1176, %v1225
          %v1242 = vsub.f32 %v1177, %v1226
          %v1243 = vsub.f32 %v1178, %v1227
          %v1244 = vsub.f32 %v1179, %v1228
          %v1245 = vsub.f32 %v1180, %v1229
          %v1246 = vsub.f32 %v1181, %v1230
          %v1247 = vsub.f32 %v1182, %v1231
          %v1248 = vsub.f32 %v1183, %v1232
          %v1249 = vsub.f32 %v1184, %v1233
          %v1250 = vsub.f32 %v1185, %v1234
          %v1251 = vsub.f32 %v1186, %v1235
          %v1252 = vmul.f32 %v1236, %v1236
          %v1253 = vmul.f32 %v1237, %v1237
          %v1254 = vmul.f32 %v1238, %v1238
          %v1255 = vmul.f32 %v1239, %v1239
          %v1256 = vmul.f32 %v1240, %v1240
          %v1257 = vmul.f32 %v1241, %v1241
          %v1258 = vmul.f32 %v1242, %v1242
          %v1259 = vmul.f32 %v1243, %v1243
          %v1260 = vmul.f32 %v1244, %v1244
          %v1261 = vmul.f32 %v1245, %v1245
          %v1262 = vmul.f32 %v1246, %v1246
          %v1263 = vmul.f32 %v1247, %v1247
          %v1264 = vmul.f32 %v1248, %v1248
          %v1265 = vmul.f32 %v1249, %v1249
          %v1266 = vmul.f32 %v1250, %v1250
          %v1267 = vmul.f32 %v1251, %v1251
          %1268 = vadd.xlane.f32.xlu0 %v1252
          %v1269 = vpop.xlane.xlu0 %1268
          %1270 = vadd.xlane.f32.xlu0 %v1253
          %v1271 = vpop.xlane.xlu0 %1270
          %1272 = vadd.xlane.f32.xlu0 %v1254
          %v1273 = vpop.xlane.xlu0 %1272
          %1274 = vadd.xlane.f32.xlu0 %v1255
          %v1275 = vpop.xlane.xlu0 %1274
          %1276 = vadd.xlane.f32.xlu0 %v1256
          %v1277 = vpop.xlane.xlu0 %1276
          %1278 = vadd.xlane.f32.xlu0 %v1257
          %v1279 = vpop.xlane.xlu0 %1278
          %1280 = vadd.xlane.f32.xlu0 %v1258
          %v1281 = vpop.xlane.xlu0 %1280
          %1282 = vadd.xlane.f32.xlu0 %v1259
          %v1283 = vpop.xlane.xlu0 %1282
          %1284 = vadd.xlane.f32.xlu0 %v1260
          %v1285 = vpop.xlane.xlu0 %1284
          %1286 = vadd.xlane.f32.xlu0 %v1261
          %v1287 = vpop.xlane.xlu0 %1286
          %1288 = vadd.xlane.f32.xlu0 %v1262
          %v1289 = vpop.xlane.xlu0 %1288
          %1290 = vadd.xlane.f32.xlu0 %v1263
          %v1291 = vpop.xlane.xlu0 %1290
          %1292 = vadd.xlane.f32.xlu0 %v1264
          %v1293 = vpop.xlane.xlu0 %1292
          %1294 = vadd.xlane.f32.xlu0 %v1265
          %v1295 = vpop.xlane.xlu0 %1294
          %1296 = vadd.xlane.f32.xlu0 %v1266
          %v1297 = vpop.xlane.xlu0 %1296
          %1298 = vadd.xlane.f32.xlu0 %v1267
          %v1299 = vpop.xlane.xlu0 %1298
          %v1300 = vmul.f32 %v1269, %v1219
          %v1301 = vmul.f32 %v1271, %v1219
          %v1302 = vmul.f32 %v1273, %v1219
          %v1303 = vmul.f32 %v1275, %v1219
          %v1304 = vmul.f32 %v1277, %v1219
          %v1305 = vmul.f32 %v1279, %v1219
          %v1306 = vmul.f32 %v1281, %v1219
          %v1307 = vmul.f32 %v1283, %v1219
          %v1308 = vmul.f32 %v1285, %v1219
          %v1309 = vmul.f32 %v1287, %v1219
          %v1310 = vmul.f32 %v1289, %v1219
          %v1311 = vmul.f32 %v1291, %v1219
          %v1312 = vmul.f32 %v1293, %v1219
          %v1313 = vmul.f32 %v1295, %v1219
          %v1314 = vmul.f32 %v1297, %v1219
          %v1315 = vmul.f32 %v1299, %v1219
          %v1316 = vadd.f32 %v1300, 1e-06
          %v1317 = vadd.f32 %v1301, 1e-06
          %v1318 = vadd.f32 %v1302, 1e-06
          %v1319 = vadd.f32 %v1303, 1e-06
          %v1320 = vadd.f32 %v1304, 1e-06
          %v1321 = vadd.f32 %v1305, 1e-06
          %v1322 = vadd.f32 %v1306, 1e-06
          %v1323 = vadd.f32 %v1307, 1e-06
          %v1324 = vadd.f32 %v1308, 1e-06
          %v1325 = vadd.f32 %v1309, 1e-06
          %v1326 = vadd.f32 %v1310, 1e-06
          %v1327 = vadd.f32 %v1311, 1e-06
          %v1328 = vadd.f32 %v1312, 1e-06
          %v1329 = vadd.f32 %v1313, 1e-06
          %v1330 = vadd.f32 %v1314, 1e-06
          %v1331 = vadd.f32 %v1315, 1e-06
          %v1332 = vrsqrt.pop %v1316
          %v1333 = vrsqrt.pop %v1317
          %v1334 = vrsqrt.pop %v1318
          %v1335 = vrsqrt.pop %v1319
          %v1336 = vrsqrt.pop %v1320
          %v1337 = vrsqrt.pop %v1321
          %v1338 = vrsqrt.pop %v1322
          %v1339 = vrsqrt.pop %v1323
          %v1340 = vrsqrt.pop %v1324
          %v1341 = vrsqrt.pop %v1325
          %v1342 = vrsqrt.pop %v1326
          %v1343 = vrsqrt.pop %v1327
          %v1344 = vrsqrt.pop %v1328
          %v1345 = vrsqrt.pop %v1329
          %v1346 = vrsqrt.pop %v1330
          %v1347 = vrsqrt.pop %v1331
          %v1348 = vmul.f32 %v1236, %v1332
          %v1349 = vmul.f32 %v1237, %v1333
          %v1350 = vmul.f32 %v1238, %v1334
          %v1351 = vmul.f32 %v1239, %v1335
          %v1352 = vmul.f32 %v1240, %v1336
          %v1353 = vmul.f32 %v1241, %v1337
          %v1354 = vmul.f32 %v1242, %v1338
          %v1355 = vmul.f32 %v1243, %v1339
          %v1356 = vmul.f32 %v1244, %v1340
          %v1357 = vmul.f32 %v1245, %v1341
          %v1358 = vmul.f32 %v1246, %v1342
          %v1359 = vmul.f32 %v1247, %v1343
          %v1360 = vmul.f32 %v1248, %v1344
          %v1361 = vmul.f32 %v1249, %v1345
          %v1362 = vmul.f32 %v1250, %v1346
          %v1363 = vmul.f32 %v1251, %v1347
          %v1364 = vld [vmem:[%s5] sm:$0x1]
          %v1366 = vlaneseq
          %v1367 = vshrl.u32 %v1366, 7
          %v1368 = vsub.s32 0, %v1367
          %v1369 = vrot.slane %v1364, %v1368
          %v1371 = vmul.f32 %v1348, %v1369
          %v1372 = vmul.f32 %v1349, %v1369
          %v1373 = vmul.f32 %v1350, %v1369
          %v1374 = vmul.f32 %v1351, %v1369
          %v1375 = vmul.f32 %v1352, %v1369
          %v1376 = vmul.f32 %v1353, %v1369
          %v1377 = vmul.f32 %v1354, %v1369
          %v1378 = vmul.f32 %v1355, %v1369
          %v1379 = vmul.f32 %v1356, %v1369
          %v1380 = vmul.f32 %v1357, %v1369
          %v1381 = vmul.f32 %v1358, %v1369
          %v1382 = vmul.f32 %v1359, %v1369
          %v1383 = vmul.f32 %v1360, %v1369
          %v1384 = vmul.f32 %v1361, %v1369
          %v1385 = vmul.f32 %v1362, %v1369
          %v1386 = vmul.f32 %v1363, %v1369
          %v1387 = vld [vmem:[%s6] sm:$0x1]
          %v1389 = vlaneseq
          %v1390 = vshrl.u32 %v1389, 7
          %v1391 = vsub.s32 0, %v1390
          %v1392 = vrot.slane %v1387, %v1391
          %v1394 = vadd.f32 %v1371, %v1392
          %v1395 = vadd.f32 %v1372, %v1392
          %v1396 = vadd.f32 %v1373, %v1392
          %v1397 = vadd.f32 %v1374, %v1392
          %v1398 = vadd.f32 %v1375, %v1392
          %v1399 = vadd.f32 %v1376, %v1392
          %v1400 = vadd.f32 %v1377, %v1392
          %v1401 = vadd.f32 %v1378, %v1392
          %v1402 = vadd.f32 %v1379, %v1392
          %v1403 = vadd.f32 %v1380, %v1392
          %v1404 = vadd.f32 %v1381, %v1392
          %v1405 = vadd.f32 %v1382, %v1392
          %v1406 = vadd.f32 %v1383, %v1392
          %v1407 = vadd.f32 %v1384, %v1392
          %v1408 = vadd.f32 %v1385, %v1392
          %v1409 = vadd.f32 %v1386, %v1392
          %1410 = vst [vmem:[%s395] sm:$0xff] %v1394
          %1411 = vst [vmem:[%s395 + $0x8] sm:$0xff] %v1395
          %1412 = vst [vmem:[%s395 + $0x10] sm:$0xff] %v1396
          %1413 = vst [vmem:[%s395 + $0x18] sm:$0xff] %v1397
          %1414 = vst [vmem:[%s395 + $0x20] sm:$0xff] %v1398
          %1415 = vst [vmem:[%s395 + $0x28] sm:$0xff] %v1399
          %1416 = vst [vmem:[%s395 + $0x30] sm:$0xff] %v1400
          %1417 = vst [vmem:[%s395 + $0x38] sm:$0xff] %v1401
          %1418 = vst [vmem:[%s395 + $0x40] sm:$0xff] %v1402
          %1419 = vst [vmem:[%s395 + $0x48] sm:$0xff] %v1403
          %1420 = vst [vmem:[%s395 + $0x50] sm:$0xff] %v1404
          %1421 = vst [vmem:[%s395 + $0x58] sm:$0xff] %v1405
          %1422 = vst [vmem:[%s395 + $0x60] sm:$0xff] %v1406
          %1423 = vst [vmem:[%s395 + $0x68] sm:$0xff] %v1407
          %1424 = vst [vmem:[%s395 + $0x70] sm:$0xff] %v1408
          %1425 = vst [vmem:[%s395 + $0x78] sm:$0xff] %v1409
        $region68: #{_feed_forward_padded.1} parent=47 // pred_fallthru
          _
        %s1426 = sand.u32 %s214, 1
        %s1427 = scalar_lea.sflag [#allocation6], %s1426
        %s1428 = sand.u32 %s214, 1
        %s1429 = smul.addr %s1428, 128
        %s1430 = scalar_lea.vmem [#allocation10], %s1429
        // Predicated region
        $region69: #{_feed_forward_padded.1} parent=47 // pred_check
          %p1431 = pneg %p224
        $region70: #{_feed_forward_padded.1} parent=47 // pred_check_branch
          %1433 = sbr.rel (%p1431) target = $region72
        $region71: #{_feed_forward_padded.1} parent=47 // pred_region
          %s1434 = smul.u32 16, %s31
          %s1436 = ssub.s32 2048, 2048
          %1437 = vsyncadd %s1427, %s1436
          %s1438 = smul.addr %s1434, 128
          %s1439 = scalar_lea.hbm %s7, %s1438
          %s1440 = sshll.u32 %s1430, 4
          %s1441 = int_to_ptr.vmem [resolvable:$true] %s1440
          %1446 = dma.vmem_to_hbm [thread:$0]  %s1441, 2048, %s1439, %s1427, 128, 128, 8
        $region72: #{_feed_forward_padded.1} parent=47 // pred_fallthru
          _
      $region48: #{_feed_forward_padded.1} parent=5 // pred_fallthru
        _
      %p1447 = scmp.le.s32.totalorder 2, %s22
      // Predicated region
      $region73: #{_feed_forward_padded.1} parent=5 // pred_check
        %p1448 = pneg %p1447
      $region74: #{_feed_forward_padded.1} parent=5 // pred_check_branch
        %1450 = sbr.rel (%p1448) target = $region76
      $region75: #{_feed_forward_padded.1} parent=5 // pred_region
        %s1451 = ssub.s32 %s22, 2
        // Predicated region
        $region77: #{_feed_forward_padded.1} parent=75 // pred_check
          %p1452 = pneg %p230
        $region78: #{_feed_forward_padded.1} parent=75 // pred_check_branch
          %1454 = sbr.rel (%p1452) target = $region80
        $region79: #{_feed_forward_padded.1} parent=75 // pred_region
          %s1455 = sand.u32 %s215, 1
          %s1456 = scalar_lea.sflag [#allocation6], %s1455
          %s1457 = sand.u32 %s215, 1
          %s1458 = smul.addr %s1457, 128
          %s1459 = scalar_lea.vmem [#allocation10], %s1458
          %1460 = dma.done %s1456, 2048
        $region80: #{_feed_forward_padded.1} parent=75 // pred_fallthru
          _
      $region76: #{_feed_forward_padded.1} parent=5 // pred_fallthru
        _
    $region6: #{_feed_forward_padded.1} parent=1 // loop_footer
      %s26 = sadd.s32 1, %s22
    $region7: #{_feed_forward_padded.1} parent=1 // loop_footer_branch
      %21 = sbr.rel target = $region3
    $region8: #{_feed_forward_padded.1} parent=1 // loop_exit
      _
    %1461 = vsyncpa [#allocation5], 1
    %s1462 = scalar_lea.sflag [#allocation5], 1
    %1463 = vsyncpa %s1462, 1
    %1464 = vsyncpa [#allocation8], 1
    %s1465 = scalar_lea.sflag [#allocation8], 1
    %1466 = vsyncpa %s1465, 1
    %1467 = vsyncpa [#allocation6], 1
    %s1468 = scalar_lea.sflag [#allocation6], 1
    %1469 = vsyncpa %s1468, 1

</llo_original>
